<compile_context>
chip_gen: v7x
topology: tpu7x:2x2x1
jax: 0.10.0
libtpu: 0.0.40
codegen_flags: <defaults>
</compile_context>

<pallas_src>
import jax
import jax.numpy as jnp
from jax.experimental import pallas as pl
from jax.experimental.pallas import tpu as pltpu

INPUT_DIM = 784
HIDDEN_DIM = 256
LATENT_DIM = 64

_SUBLANE = 16              # tile-row granularity legal for both f32 and bf16
DEFAULT_MAX_TILE = 512     # ~10 MB working set -> inside v5e's 16 MiB scoped VMEM
SINGLE_TILE_MAX_ROWS = 32  # at/below this, one full-array block (latency path)


def _round_up(n, m):
    return ((n + m - 1) // m) * m


def autoencoder_kernel(x_ref,
                       w1_ref, b1_ref,
                       w2_ref, b2_ref,
                       w3_ref, b3_ref,
                       w4_ref, b4_ref,
                       out_ref):
    cdt = w1_ref.dtype                     # matmul operand dtype (bf16 or f32)
    # x arrives as raw f32 from HBM; cast on the VPU (free in a DMA-bound
    # regime) instead of materializing a casted copy in HBM.
    x = x_ref[...].astype(cdt)             # (tb, 784)

    # encoder: Linear(784,256) + ReLU      (MXU, f32 accumulate)
    h1 = jnp.dot(x, w1_ref[...], preferred_element_type=jnp.float32) + b1_ref[...]
    h1 = jnp.maximum(h1, 0.0)

    # encoder: Linear(256,64) -> latent z  (no activation)
    z = jnp.dot(h1.astype(cdt), w2_ref[...],
                preferred_element_type=jnp.float32) + b2_ref[...]

    # decoder: Linear(64,256) + ReLU
    h2 = jnp.dot(z.astype(cdt), w3_ref[...],
                 preferred_element_type=jnp.float32) + b3_ref[...]
    h2 = jnp.maximum(h2, 0.0)

    # decoder: Linear(256,784) + Sigmoid
    logits = jnp.dot(h2.astype(cdt), w4_ref[...],
                     preferred_element_type=jnp.float32) + b4_ref[...]
    # sigmoid(x) = 1 / (1 + exp(-x)): exp and approx reciprocal both run on the
    # EUP slot, keeping the VALU / vst slot free (matters on v5e).
    out = pl.reciprocal(1.0 + jnp.exp(-logits), approx=True)
    out_ref[...] = out.astype(out_ref.dtype)


def autoencoder_forward(x, params, *, batch_tile=None, use_bf16=True,
                        out_dtype=jnp.bfloat16, vmem_limit_bytes=None,
                        single_buffer_params=False):
    """x: (B, 784) float32. params: (in,out) weights and (1,out) biases.

    batch_tile: rows per grid step (multiple of 16). Default: single block for
    tiny batches, otherwise min(512, round_up(ceil(B/2), 16)) so there are
    always >= 2 parallel grid steps (one per v7x TensorCore), capped for VMEM.
    out_dtype: bf16 default (sigmoid outputs in [0,1] lose nothing meaningful
    and it halves the dominant HBM store traffic). Pass jnp.float32 if needed.
    """
    B, D = x.shape
    assert D == INPUT_DIM
    compute_dtype = jnp.bfloat16 if use_bf16 else jnp.float32

    # ---- batch tile selection (MXU-friendly, sublane-legal) ----------------
    if batch_tile is None:
        if B <= SINGLE_TILE_MAX_ROWS:
            tb = B                    # block == full array: always layout-legal
        else:
            # >=2 grid steps (v7x megacore), capped at 512 rows (v5e VMEM).
            tb = min(DEFAULT_MAX_TILE, _round_up(pl.cdiv(B, 2), _SUBLANE))
    else:
        tb = batch_tile
        assert tb % _SUBLANE == 0, "batch_tile must be a multiple of 16"
    # No padding: the last block may be partial; Pallas masks its writeback and
    # the garbage rows in the padded input region never touch valid rows
    # (every row flows through the MLP independently).
    grid = (pl.cdiv(B, tb),)

    # ---- one-time parameter prep (outside the kernel / grid loop) ----------
    w1 = params["w1"].astype(compute_dtype)
    w2 = params["w2"].astype(compute_dtype)
    w3 = params["w3"].astype(compute_dtype)
    w4 = params["w4"].astype(compute_dtype)
    # biases stay f32: added after the f32 MXU accumulation.
    b1 = params["b1"].astype(jnp.float32)
    b2 = params["b2"].astype(jnp.float32)
    b3 = params["b3"].astype(jnp.float32)
    b4 = params["b4"].astype(jnp.float32)

    # Weights/biases: constant index_map -> fetched once, resident in VMEM.
    if single_buffer_params:
        # They never change across grid steps, so a single buffer suffices
        # (saves ~0.9 MB of VMEM; useful headroom on v7x's 64 MiB VMEM).
        def full(a):
            return pl.BlockSpec(a.shape, lambda i: (0, 0),
                                pipeline_mode=pl.Buffered(1))
    else:
        def full(a):
            return pl.BlockSpec(a.shape, lambda i: (0, 0))

    # Advisory cost model for XLA's scheduler.
    macs_per_row = (INPUT_DIM * HIDDEN_DIM + HIDDEN_DIM * LATENT_DIM
                    + LATENT_DIM * HIDDEN_DIM + HIDDEN_DIM * INPUT_DIM)
    param_bytes = sum(int(a.size) * a.dtype.itemsize
                      for a in (w1, b1, w2, b2, w3, b3, w4, b4))
    out_itemsize = jnp.dtype(out_dtype).itemsize
    cost = pl.CostEstimate(
        flops=2 * B * macs_per_row,
        transcendentals=2 * B * INPUT_DIM,            # exp + reciprocal (EUP)
        bytes_accessed=B * INPUT_DIM * (x.dtype.itemsize + out_itemsize)
                       + param_bytes,
    )

    return pl.pallas_call(
        autoencoder_kernel,
        out_shape=jax.ShapeDtypeStruct((B, INPUT_DIM), out_dtype),
        grid_spec=pltpu.PrefetchScalarGridSpec(
            num_scalar_prefetch=0,
            grid=grid,
            in_specs=[
                pl.BlockSpec((tb, INPUT_DIM), lambda i: (i, 0)),   # x tile (f32)
                full(w1), full(b1),
                full(w2), full(b2),
                full(w3), full(b3),
                full(w4), full(b4),
            ],
            out_specs=pl.BlockSpec((tb, INPUT_DIM), lambda i: (i, 0)),
        ),
        compiler_params=pltpu.CompilerParams(
            dimension_semantics=("parallel",),   # batch axis -> v7x megacore
            vmem_limit_bytes=vmem_limit_bytes,   # only needed for tb >= 1024
        ),
        cost_estimate=cost,
    )(x, w1, b1, w2, b2, w3, b3, w4, b4)


def init_params(key):
    """Deterministic synthetic parameters (same shapes as the PyTorch module)."""
    def linear(key, in_dim, out_dim):
        kw, kb = jax.random.split(key)
        # PyTorch nn.Linear init: U(-1/sqrt(in), 1/sqrt(in)) on weight and bias.
        bound = 1.0 / jnp.sqrt(jnp.float32(in_dim))
        # Weight stored as (in, out) == torch_weight.T so the kernel does x @ W.
        w = jax.random.uniform(kw, (in_dim, out_dim), jnp.float32, -bound, bound)
        b = jax.random.uniform(kb, (1, out_dim), jnp.float32, -bound, bound)
        return w, b

    k1, k2, k3, k4 = jax.random.split(key, 4)
    w1, b1 = linear(k1, INPUT_DIM, HIDDEN_DIM)   # encoder[0]
    w2, b2 = linear(k2, HIDDEN_DIM, LATENT_DIM)  # encoder[2]
    w3, b3 = linear(k3, LATENT_DIM, HIDDEN_DIM)  # decoder[0]
    w4, b4 = linear(k4, HIDDEN_DIM, INPUT_DIM)   # decoder[2]
    return dict(w1=w1, b1=b1, w2=w2, b2=b2, w3=w3, b3=b3, w4=w4, b4=b4)


def reference_forward(x, p, compute_dtype=jnp.float32):
    """Pure-JAX reference matching the PyTorch forward (optionally bf16 dots)."""
    c = lambda a: a.astype(compute_dtype)
    h1 = jnp.maximum(
        jnp.dot(c(x), c(p["w1"]), preferred_element_type=jnp.float32) + p["b1"], 0.0)
    z = jnp.dot(c(h1), c(p["w2"]), preferred_element_type=jnp.float32) + p["b2"]
    h2 = jnp.maximum(
        jnp.dot(c(z), c(p["w3"]), preferred_element_type=jnp.float32) + p["b3"], 0.0)
    return jax.nn.sigmoid(
        jnp.dot(c(h2), c(p["w4"]), preferred_element_type=jnp.float32) + p["b4"])


if __name__ == "__main__":
    key = jax.random.PRNGKey(0)
    kp, kx, kx2 = jax.random.split(key, 3)
    params = init_params(kp)

    # --- small demo batch (latency path: one full-array block) --------------
    batch = 8
    x = jax.random.uniform(kx, (batch, INPUT_DIM), jnp.float32)
    out = jax.block_until_ready(autoencoder_forward(x, params))
    assert out.shape == (batch, INPUT_DIM)
    assert out.dtype == jnp.bfloat16

    out_f32 = out.astype(jnp.float32)
    ref_bf16 = reference_forward(x, params, compute_dtype=jnp.bfloat16)
    ref_f32 = reference_forward(x, params, compute_dtype=jnp.float32)
    # bf16 output quantization (~2e-3 for values near 1) dominates vs bf16 ref;
    # sigmoid outputs bounded in [0,1] make these absolute tolerances valid.
    assert jnp.allclose(out_f32, ref_bf16, atol=5e-3), "mismatch vs bf16 ref"
    assert jnp.allclose(out_f32, ref_f32, atol=2.5e-2), "mismatch vs f32 ref"

    # --- tiled path: ragged batch, multi-step parallel grid, partial block --
    batch2 = 50                    # grid = cdiv(50, 32) = 2; last block masked
    x2 = jax.random.uniform(kx2, (batch2, INPUT_DIM), jnp.float32)
    out2 = jax.block_until_ready(
        autoencoder_forward(x2, params, batch_tile=32))
    assert out2.shape == (batch2, INPUT_DIM)
    ref2 = reference_forward(x2, params, compute_dtype=jnp.bfloat16)
    assert jnp.allclose(out2.astype(jnp.float32), ref2, atol=5e-3), "tiled mismatch"

    print("KERNEL_OK")
</pallas_src>

<mosaic_0001>
module attributes {stable_mosaic.version = 11 : i64} {
  func.func @autoencoder_kernel(%arg0: i32, %arg1: memref<8x784xf32, #tpu.memory_space<vmem>>, %arg2: memref<784x256xbf16, #tpu.memory_space<vmem>>, %arg3: memref<1x256xf32, #tpu.memory_space<vmem>>, %arg4: memref<256x64xbf16, #tpu.memory_space<vmem>>, %arg5: memref<1x64xf32, #tpu.memory_space<vmem>>, %arg6: memref<64x256xbf16, #tpu.memory_space<vmem>>, %arg7: memref<1x256xf32, #tpu.memory_space<vmem>>, %arg8: memref<256x784xbf16, #tpu.memory_space<vmem>>, %arg9: memref<1x784xf32, #tpu.memory_space<vmem>>, %arg10: memref<8x784xbf16, #tpu.memory_space<vmem>>) attributes {dimension_semantics = [#tpu.dimension_semantics<parallel>], iteration_bounds = array<i64: 1>, scalar_prefetch = 0 : i64, scratch_operands = 0 : i64, tpu.core_type = #tpu.core_type<tc>, window_params = [{transform_indices = @transform_0, window_bounds = array<i64: 8, 784>}, {pipeline_mode = #tpu.pipeline_mode<synchronous>, transform_indices = @transform_1, window_bounds = array<i64: 784, 256>}, {pipeline_mode = #tpu.pipeline_mode<synchronous>, transform_indices = @transform_2, window_bounds = array<i64: 1, 256>}, {pipeline_mode = #tpu.pipeline_mode<synchronous>, transform_indices = @transform_3, window_bounds = array<i64: 256, 64>}, {pipeline_mode = #tpu.pipeline_mode<synchronous>, transform_indices = @transform_4, window_bounds = array<i64: 1, 64>}, {pipeline_mode = #tpu.pipeline_mode<synchronous>, transform_indices = @transform_5, window_bounds = array<i64: 64, 256>}, {pipeline_mode = #tpu.pipeline_mode<synchronous>, transform_indices = @transform_6, window_bounds = array<i64: 1, 256>}, {pipeline_mode = #tpu.pipeline_mode<synchronous>, transform_indices = @transform_7, window_bounds = array<i64: 256, 784>}, {pipeline_mode = #tpu.pipeline_mode<synchronous>, transform_indices = @transform_8, window_bounds = array<i64: 1, 784>}, {transform_indices = @transform_9, window_bounds = array<i64: 8, 784>}]} {
    %c0 = arith.constant 0 : index
    %c0_0 = arith.constant 0 : index
    %0 = vector.load %arg1[%c0, %c0_0] : memref<8x784xf32, #tpu.memory_space<vmem>>, vector<8x784xf32>
    %1 = arith.truncf %0 : vector<8x784xf32> to vector<8x784xbf16>
    %c0_1 = arith.constant 0 : index
    %c0_2 = arith.constant 0 : index
    %2 = vector.load %arg2[%c0_1, %c0_2] : memref<784x256xbf16, #tpu.memory_space<vmem>>, vector<784x256xbf16>
    %cst = arith.constant dense<0.000000e+00> : vector<8x256xf32>
    %3 = tpu.matmul %1, %2, %cst {dimension_numbers = #tpu.dot_dimension_numbers<[1], [0], [0], [1], [0, 0, 1, 1], [], []>} : vector<8x784xbf16>, vector<784x256xbf16>, vector<8x256xf32> -> vector<8x256xf32>
    %c0_3 = arith.constant 0 : index
    %c0_4 = arith.constant 0 : index
    %4 = vector.load %arg3[%c0_3, %c0_4] : memref<1x256xf32, #tpu.memory_space<vmem>>, vector<1x256xf32>
    %5 = vector.broadcast %4 : vector<1x256xf32> to vector<8x256xf32>
    %6 = arith.addf %3, %5 : vector<8x256xf32>
    %cst_5 = arith.constant 0.000000e+00 : f32
    %7 = vector.broadcast %cst_5 : f32 to vector<8x256xf32>
    %8 = arith.maximumf %6, %7 : vector<8x256xf32>
    %9 = arith.truncf %8 : vector<8x256xf32> to vector<8x256xbf16>
    %c0_6 = arith.constant 0 : index
    %c0_7 = arith.constant 0 : index
    %10 = vector.load %arg4[%c0_6, %c0_7] : memref<256x64xbf16, #tpu.memory_space<vmem>>, vector<256x64xbf16>
    %cst_8 = arith.constant dense<0.000000e+00> : vector<8x64xf32>
    %11 = tpu.matmul %9, %10, %cst_8 {dimension_numbers = #tpu.dot_dimension_numbers<[1], [0], [0], [1], [0, 0, 1, 1], [], []>} : vector<8x256xbf16>, vector<256x64xbf16>, vector<8x64xf32> -> vector<8x64xf32>
    %c0_9 = arith.constant 0 : index
    %c0_10 = arith.constant 0 : index
    %12 = vector.load %arg5[%c0_9, %c0_10] : memref<1x64xf32, #tpu.memory_space<vmem>>, vector<1x64xf32>
    %13 = vector.broadcast %12 : vector<1x64xf32> to vector<8x64xf32>
    %14 = arith.addf %11, %13 : vector<8x64xf32>
    %15 = arith.truncf %14 : vector<8x64xf32> to vector<8x64xbf16>
    %c0_11 = arith.constant 0 : index
    %c0_12 = arith.constant 0 : index
    %16 = vector.load %arg6[%c0_11, %c0_12] : memref<64x256xbf16, #tpu.memory_space<vmem>>, vector<64x256xbf16>
    %cst_13 = arith.constant dense<0.000000e+00> : vector<8x256xf32>
    %17 = tpu.matmul %15, %16, %cst_13 {dimension_numbers = #tpu.dot_dimension_numbers<[1], [0], [0], [1], [0, 0, 1, 1], [], []>} : vector<8x64xbf16>, vector<64x256xbf16>, vector<8x256xf32> -> vector<8x256xf32>
    %c0_14 = arith.constant 0 : index
    %c0_15 = arith.constant 0 : index
    %18 = vector.load %arg7[%c0_14, %c0_15] : memref<1x256xf32, #tpu.memory_space<vmem>>, vector<1x256xf32>
    %19 = vector.broadcast %18 : vector<1x256xf32> to vector<8x256xf32>
    %20 = arith.addf %17, %19 : vector<8x256xf32>
    %cst_16 = arith.constant 0.000000e+00 : f32
    %21 = vector.broadcast %cst_16 : f32 to vector<8x256xf32>
    %22 = arith.maximumf %20, %21 : vector<8x256xf32>
    %23 = arith.truncf %22 : vector<8x256xf32> to vector<8x256xbf16>
    %c0_17 = arith.constant 0 : index
    %c0_18 = arith.constant 0 : index
    %24 = vector.load %arg8[%c0_17, %c0_18] : memref<256x784xbf16, #tpu.memory_space<vmem>>, vector<256x784xbf16>
    %cst_19 = arith.constant dense<0.000000e+00> : vector<8x784xf32>
    %25 = tpu.matmul %23, %24, %cst_19 {dimension_numbers = #tpu.dot_dimension_numbers<[1], [0], [0], [1], [0, 0, 1, 1], [], []>} : vector<8x256xbf16>, vector<256x784xbf16>, vector<8x784xf32> -> vector<8x784xf32>
    %c0_20 = arith.constant 0 : index
    %c0_21 = arith.constant 0 : index
    %26 = vector.load %arg9[%c0_20, %c0_21] : memref<1x784xf32, #tpu.memory_space<vmem>>, vector<1x784xf32>
    %27 = vector.broadcast %26 : vector<1x784xf32> to vector<8x784xf32>
    %28 = arith.addf %25, %27 : vector<8x784xf32>
    %cst_22 = arith.constant 0.000000e+00 : f32
    %29 = vector.broadcast %cst_22 : f32 to vector<8x784xf32>
    %30 = arith.subf %29, %28 : vector<8x784xf32>
    %31 = math.exp %30 : vector<8x784xf32>
    %cst_23 = arith.constant 1.000000e+00 : f32
    %32 = vector.broadcast %cst_23 : f32 to vector<8x784xf32>
    %33 = arith.addf %32, %31 : vector<8x784xf32>
    %34 = tpu.reciprocal %33 {approx = true} : vector<8x784xf32> -> vector<8x784xf32>
    %35 = arith.truncf %34 : vector<8x784xf32> to vector<8x784xbf16>
    %c0_24 = arith.constant 0 : index
    %c0_25 = arith.constant 0 : index
    %36 = vector.load %arg10[%c0_24, %c0_25] : memref<8x784xbf16, #tpu.memory_space<vmem>>, vector<8x784xbf16>
    tpu.vector_store %arg10[%c0_24, %c0_25], %35 {strides = array<i32>} : memref<8x784xbf16, #tpu.memory_space<vmem>>, vector<8x784xbf16>,
    return
  }
  func.func @transform_0(%arg0: i32) -> (i32, i32) {
    %c0_i32 = arith.constant 0 : i32
    %c0_i32_0 = arith.constant 0 : i32
    return %arg0, %c0_i32 : i32, i32
  }
  func.func @transform_1(%arg0: i32) -> (i32, i32) {
    %c0_i32 = arith.constant 0 : i32
    %c0_i32_0 = arith.constant 0 : i32
    %c0_i32_1 = arith.constant 0 : i32
    return %c0_i32, %c0_i32_0 : i32, i32
  }
  func.func @transform_2(%arg0: i32) -> (i32, i32) {
    %c0_i32 = arith.constant 0 : i32
    %c0_i32_0 = arith.constant 0 : i32
    %c0_i32_1 = arith.constant 0 : i32
    return %c0_i32, %c0_i32_0 : i32, i32
  }
  func.func @transform_3(%arg0: i32) -> (i32, i32) {
    %c0_i32 = arith.constant 0 : i32
    %c0_i32_0 = arith.constant 0 : i32
    %c0_i32_1 = arith.constant 0 : i32
    return %c0_i32, %c0_i32_0 : i32, i32
  }
  func.func @transform_4(%arg0: i32) -> (i32, i32) {
    %c0_i32 = arith.constant 0 : i32
    %c0_i32_0 = arith.constant 0 : i32
    %c0_i32_1 = arith.constant 0 : i32
    return %c0_i32, %c0_i32_0 : i32, i32
  }
  func.func @transform_5(%arg0: i32) -> (i32, i32) {
    %c0_i32 = arith.constant 0 : i32
    %c0_i32_0 = arith.constant 0 : i32
    %c0_i32_1 = arith.constant 0 : i32
    return %c0_i32, %c0_i32_0 : i32, i32
  }
  func.func @transform_6(%arg0: i32) -> (i32, i32) {
    %c0_i32 = arith.constant 0 : i32
    %c0_i32_0 = arith.constant 0 : i32
    %c0_i32_1 = arith.constant 0 : i32
    return %c0_i32, %c0_i32_0 : i32, i32
  }
  func.func @transform_7(%arg0: i32) -> (i32, i32) {
    %c0_i32 = arith.constant 0 : i32
    %c0_i32_0 = arith.constant 0 : i32
    %c0_i32_1 = arith.constant 0 : i32
    return %c0_i32, %c0_i32_0 : i32, i32
  }
  func.func @transform_8(%arg0: i32) -> (i32, i32) {
    %c0_i32 = arith.constant 0 : i32
    %c0_i32_0 = arith.constant 0 : i32
    %c0_i32_1 = arith.constant 0 : i32
    return %c0_i32, %c0_i32_0 : i32, i32
  }
  func.func @transform_9(%arg0: i32) -> (i32, i32) {
    %c0_i32 = arith.constant 0 : i32
    %c0_i32_0 = arith.constant 0 : i32
    return %arg0, %c0_i32 : i32, i32
  }
}

</mosaic_0001>

<llo_original>
// kernel: tpu_custom_call.1
$region0: #{tpu_custom_call.1}
  #allocation0 [shape = 'u32[]', space=smem, size = 0x4, offset = 0x4, fixed_abs, tag = 'smem constant byte address 0x4 - core index']
  #allocation1 [shape = 'u32[144,128]{1,0:T(1,128)}', space=vmem, size = 0x12000, scoped, tag = 'internal scratch']
  %s0 = inlined_call_operand.vmem [shape: f32[8,784], index: 0, kind: input, shape index: {}]
  %s1 = inlined_call_operand.vmem [shape: bf16[784,256], index: 1, kind: input, shape index: {}]
  %s2 = inlined_call_operand.vmem [shape: f32[1,256], index: 2, kind: input, shape index: {}]
  %s3 = inlined_call_operand.vmem [shape: bf16[256,64], index: 3, kind: input, shape index: {}]
  %s4 = inlined_call_operand.vmem [shape: f32[1,64], index: 4, kind: input, shape index: {}]
  %s5 = inlined_call_operand.vmem [shape: bf16[64,256], index: 5, kind: input, shape index: {}]
  %s6 = inlined_call_operand.vmem [shape: f32[1,256], index: 6, kind: input, shape index: {}]
  %s7 = inlined_call_operand.vmem [shape: bf16[256,784], index: 7, kind: input, shape index: {}]
  %s8 = inlined_call_operand.vmem [shape: f32[1,784], index: 8, kind: input, shape index: {}]
  %s9 = inlined_call_operand.hbm [shape: bf16[8,784], index: 9, kind: output, shape index: {}]
  %s10 = sld [smem:[#allocation0]]
  $region46: #{tpu_custom_call.1} parent=0
    _
  %s12 = ssub.s32 1, %s10
  %s13 = scalar_select 0, %s12, %s10
  $region1: #{tpu_custom_call.1} parent=0
    #allocation2 [shape = 'u8[14336]{0}', space=vmem, size = 0x3800, scoped, tag = 'output window, operand 0, single buffered']
    #allocation3 [shape = 's32[1]{0}', space=sflag, size = 0x4, scoped, tag = 'scoped memory for tpu_custom_call.1']
    %14 = vsyncpa [#allocation3], 0
    // Predicated region
    $region2: #{tpu_custom_call.1} parent=1 // pred_check
      _
    $region3: #{tpu_custom_call.1} parent=1 // pred_check_branch
      %16 = sbr.rel (0) target = $region5
    $region4: #{tpu_custom_call.1} parent=1 // pred_region
      _
    $region5: #{tpu_custom_call.1} parent=1 // pred_fallthru
      _
    // Predicated region
    $region6: #{tpu_custom_call.1} parent=1 // pred_check
      _
    $region7: #{tpu_custom_call.1} parent=1 // pred_check_branch
      %18 = sbr.rel (0) target = $region9
    $region8: #{tpu_custom_call.1} parent=1 // pred_region
      _
    $region9: #{tpu_custom_call.1} parent=1 // pred_fallthru
      _
    // Predicated region
    $region10: #{tpu_custom_call.1} parent=1 // pred_check
      _
    $region11: #{tpu_custom_call.1} parent=1 // pred_check_branch
      %20 = sbr.rel (0) target = $region13
    $region12: #{tpu_custom_call.1} parent=1 // pred_region
      _
    $region13: #{tpu_custom_call.1} parent=1 // pred_fallthru
      _
    // Predicated region
    $region14: #{tpu_custom_call.1} parent=1 // pred_check
      _
    $region15: #{tpu_custom_call.1} parent=1 // pred_check_branch
      %22 = sbr.rel (0) target = $region17
    $region16: #{tpu_custom_call.1} parent=1 // pred_region
      _
    $region17: #{tpu_custom_call.1} parent=1 // pred_fallthru
      _
    // Predicated region
    $region18: #{tpu_custom_call.1} parent=1 // pred_check
      _
    $region19: #{tpu_custom_call.1} parent=1 // pred_check_branch
      %24 = sbr.rel (0) target = $region21
    $region20: #{tpu_custom_call.1} parent=1 // pred_region
      _
    $region21: #{tpu_custom_call.1} parent=1 // pred_fallthru
      _
    // Predicated region
    $region22: #{tpu_custom_call.1} parent=1 // pred_check
      _
    $region23: #{tpu_custom_call.1} parent=1 // pred_check_branch
      %26 = sbr.rel (0) target = $region25
    $region24: #{tpu_custom_call.1} parent=1 // pred_region
      _
    $region25: #{tpu_custom_call.1} parent=1 // pred_fallthru
      _
    // Predicated region
    $region26: #{tpu_custom_call.1} parent=1 // pred_check
      _
    $region27: #{tpu_custom_call.1} parent=1 // pred_check_branch
      %28 = sbr.rel (0) target = $region29
    $region28: #{tpu_custom_call.1} parent=1 // pred_region
      _
    $region29: #{tpu_custom_call.1} parent=1 // pred_fallthru
      _
    // Predicated region
    $region30: #{tpu_custom_call.1} parent=1 // pred_check
      _
    $region31: #{tpu_custom_call.1} parent=1 // pred_check_branch
      %30 = sbr.rel (0) target = $region33
    $region32: #{tpu_custom_call.1} parent=1 // pred_region
      _
    $region33: #{tpu_custom_call.1} parent=1 // pred_fallthru
      _
    // Predicated region
    $region34: #{tpu_custom_call.1} parent=1 // pred_check
      _
    $region35: #{tpu_custom_call.1} parent=1 // pred_check_branch
      %32 = sbr.rel (0) target = $region37
    $region36: #{tpu_custom_call.1} parent=1 // pred_region
      _
    $region37: #{tpu_custom_call.1} parent=1 // pred_fallthru
      _
    %v34 = vld [vmem:[%s0] sm:$0xff]
    %v35 = vld [vmem:[%s0 + $0x8] sm:$0xff]
    %v36 = vld [vmem:[%s0 + $0x10] sm:$0xff]
    %v37 = vld [vmem:[%s0 + $0x18] sm:$0xff]
    %v38 = vld [vmem:[%s0 + $0x20] sm:$0xff]
    %v39 = vld [vmem:[%s0 + $0x28] sm:$0xff]
    %v40 = vld [vmem:[%s0 + $0x30] sm:$0xff]
    %v41 = vpack.c.bf16 %v34, %v34
    %v42 = vpack.c.bf16 %v35, %v35
    %v43 = vpack.c.bf16 %v36, %v36
    %v44 = vpack.c.bf16 %v37, %v37
    %v45 = vpack.c.bf16 %v38, %v38
    %v46 = vpack.c.bf16 %v39, %v39
    %v47 = vpack.c.bf16 %v40, %v40
    %v48 = vld [vmem:[%s1] sm:$0xff]
    %v49 = vld [vmem:[%s1 + $0x8] sm:$0xff]
    %v50 = vld [vmem:[%s1 + $0x10] sm:$0xff]
    %v51 = vld [vmem:[%s1 + $0x18] sm:$0xff]
    %v52 = vld [vmem:[%s1 + $0x20] sm:$0xff]
    %v53 = vld [vmem:[%s1 + $0x28] sm:$0xff]
    %v54 = vld [vmem:[%s1 + $0x30] sm:$0xff]
    %v55 = vld [vmem:[%s1 + $0x38] sm:$0xff]
    %v56 = vld [vmem:[%s1 + $0x40] sm:$0xff]
    %v57 = vld [vmem:[%s1 + $0x48] sm:$0xff]
    %v58 = vld [vmem:[%s1 + $0x50] sm:$0xff]
    %v59 = vld [vmem:[%s1 + $0x58] sm:$0xff]
    %v60 = vld [vmem:[%s1 + $0x60] sm:$0xff]
    %v61 = vld [vmem:[%s1 + $0x68] sm:$0xff]
    %v62 = vld [vmem:[%s1 + $0x70] sm:$0xff]
    %v63 = vld [vmem:[%s1 + $0x78] sm:$0xff]
    %v64 = vld [vmem:[%s1 + $0x80] sm:$0xff]
    %v65 = vld [vmem:[%s1 + $0x88] sm:$0xff]
    %v66 = vld [vmem:[%s1 + $0x90] sm:$0xff]
    %v67 = vld [vmem:[%s1 + $0x98] sm:$0xff]
    %v68 = vld [vmem:[%s1 + $0xa0] sm:$0xff]
    %v69 = vld [vmem:[%s1 + $0xa8] sm:$0xff]
    %v70 = vld [vmem:[%s1 + $0xb0] sm:$0xff]
    %v71 = vld [vmem:[%s1 + $0xb8] sm:$0xff]
    %v72 = vld [vmem:[%s1 + $0xc0] sm:$0xff]
    %v73 = vld [vmem:[%s1 + $0xc8] sm:$0xff]
    %v74 = vld [vmem:[%s1 + $0xd0] sm:$0xff]
    %v75 = vld [vmem:[%s1 + $0xd8] sm:$0xff]
    %v76 = vld [vmem:[%s1 + $0xe0] sm:$0xff]
    %v77 = vld [vmem:[%s1 + $0xe8] sm:$0xff]
    %v78 = vld [vmem:[%s1 + $0xf0] sm:$0xff]
    %v79 = vld [vmem:[%s1 + $0xf8] sm:$0xff]
    %v80 = vld [vmem:[%s1 + $0x100] sm:$0xff]
    %v81 = vld [vmem:[%s1 + $0x108] sm:$0xff]
    %v82 = vld [vmem:[%s1 + $0x110] sm:$0xff]
    %v83 = vld [vmem:[%s1 + $0x118] sm:$0xff]
    %v84 = vld [vmem:[%s1 + $0x120] sm:$0xff]
    %v85 = vld [vmem:[%s1 + $0x128] sm:$0xff]
    %v86 = vld [vmem:[%s1 + $0x130] sm:$0xff]
    %v87 = vld [vmem:[%s1 + $0x138] sm:$0xff]
    %v88 = vld [vmem:[%s1 + $0x140] sm:$0xff]
    %v89 = vld [vmem:[%s1 + $0x148] sm:$0xff]
    %v90 = vld [vmem:[%s1 + $0x150] sm:$0xff]
    %v91 = vld [vmem:[%s1 + $0x158] sm:$0xff]
    %v92 = vld [vmem:[%s1 + $0x160] sm:$0xff]
    %v93 = vld [vmem:[%s1 + $0x168] sm:$0xff]
    %v94 = vld [vmem:[%s1 + $0x170] sm:$0xff]
    %v95 = vld [vmem:[%s1 + $0x178] sm:$0xff]
    %v96 = vld [vmem:[%s1 + $0x180] sm:$0xff]
    %v97 = vld [vmem:[%s1 + $0x188] sm:$0xff]
    %v98 = vld [vmem:[%s1 + $0x190] sm:$0xff]
    %v99 = vld [vmem:[%s1 + $0x198] sm:$0xff]
    %v100 = vld [vmem:[%s1 + $0x1a0] sm:$0xff]
    %v101 = vld [vmem:[%s1 + $0x1a8] sm:$0xff]
    %v102 = vld [vmem:[%s1 + $0x1b0] sm:$0xff]
    %v103 = vld [vmem:[%s1 + $0x1b8] sm:$0xff]
    %v104 = vld [vmem:[%s1 + $0x1c0] sm:$0xff]
    %v105 = vld [vmem:[%s1 + $0x1c8] sm:$0xff]
    %v106 = vld [vmem:[%s1 + $0x1d0] sm:$0xff]
    %v107 = vld [vmem:[%s1 + $0x1d8] sm:$0xff]
    %v108 = vld [vmem:[%s1 + $0x1e0] sm:$0xff]
    %v109 = vld [vmem:[%s1 + $0x1e8] sm:$0xff]
    %v110 = vld [vmem:[%s1 + $0x1f0] sm:$0xff]
    %v111 = vld [vmem:[%s1 + $0x1f8] sm:$0xff]
    %v112 = vld [vmem:[%s1 + $0x200] sm:$0xff]
    %v113 = vld [vmem:[%s1 + $0x208] sm:$0xff]
    %v114 = vld [vmem:[%s1 + $0x210] sm:$0xff]
    %v115 = vld [vmem:[%s1 + $0x218] sm:$0xff]
    %v116 = vld [vmem:[%s1 + $0x220] sm:$0xff]
    %v117 = vld [vmem:[%s1 + $0x228] sm:$0xff]
    %v118 = vld [vmem:[%s1 + $0x230] sm:$0xff]
    %v119 = vld [vmem:[%s1 + $0x238] sm:$0xff]
    %v120 = vld [vmem:[%s1 + $0x240] sm:$0xff]
    %v121 = vld [vmem:[%s1 + $0x248] sm:$0xff]
    %v122 = vld [vmem:[%s1 + $0x250] sm:$0xff]
    %v123 = vld [vmem:[%s1 + $0x258] sm:$0xff]
    %v124 = vld [vmem:[%s1 + $0x260] sm:$0xff]
    %v125 = vld [vmem:[%s1 + $0x268] sm:$0xff]
    %v126 = vld [vmem:[%s1 + $0x270] sm:$0xff]
    %v127 = vld [vmem:[%s1 + $0x278] sm:$0xff]
    %v128 = vld [vmem:[%s1 + $0x280] sm:$0xff]
    %v129 = vld [vmem:[%s1 + $0x288] sm:$0xff]
    %v130 = vld [vmem:[%s1 + $0x290] sm:$0xff]
    %v131 = vld [vmem:[%s1 + $0x298] sm:$0xff]
    %v132 = vld [vmem:[%s1 + $0x2a0] sm:$0xff]
    %v133 = vld [vmem:[%s1 + $0x2a8] sm:$0xff]
    %v134 = vld [vmem:[%s1 + $0x2b0] sm:$0xff]
    %v135 = vld [vmem:[%s1 + $0x2b8] sm:$0xff]
    %v136 = vld [vmem:[%s1 + $0x2c0] sm:$0xff]
    %v137 = vld [vmem:[%s1 + $0x2c8] sm:$0xff]
    %v138 = vld [vmem:[%s1 + $0x2d0] sm:$0xff]
    %v139 = vld [vmem:[%s1 + $0x2d8] sm:$0xff]
    %v140 = vld [vmem:[%s1 + $0x2e0] sm:$0xff]
    %v141 = vld [vmem:[%s1 + $0x2e8] sm:$0xff]
    %v142 = vld [vmem:[%s1 + $0x2f0] sm:$0xff]
    %v143 = vld [vmem:[%s1 + $0x2f8] sm:$0xff]
    %v144 = vld [vmem:[%s1 + $0x300] sm:$0xff]
    %v145 = vld [vmem:[%s1 + $0x308] sm:$0xff]
    %v146 = vld [vmem:[%s2] sm:$0x3]
    %v148 = vlaneseq
    %v149 = vshrl.u32 %v148, 7
    %v150 = vsub.s32 0, %v149
    %v151 = vrot.slane %v146, %v150
    %v152 = vlaneseq
    %v153 = vshrl.u32 %v152, 7
    %v154 = vsub.s32 1, %v153
    %v155 = vrot.slane %v146, %v154
    %v256 = vunpack.c.l.b16 %v48
    %v257 = vunpack.c.h.b16 %v48
    %v258 = vunpack.c.l.b16 %v49
    %v259 = vunpack.c.h.b16 %v49
    %v260 = vunpack.c.l.b16 %v50
    %v261 = vunpack.c.h.b16 %v50
    %v262 = vunpack.c.l.b16 %v51
    %v263 = vunpack.c.h.b16 %v51
    %v264 = vunpack.c.l.b16 %v52
    %v265 = vunpack.c.h.b16 %v52
    %v266 = vunpack.c.l.b16 %v53
    %v267 = vunpack.c.h.b16 %v53
    %v268 = vunpack.c.l.b16 %v54
    %v269 = vunpack.c.h.b16 %v54
    %v270 = vunpack.c.l.b16 %v55
    %v271 = vunpack.c.h.b16 %v55
    %v272 = vunpack.c.l.b16 %v56
    %v273 = vunpack.c.h.b16 %v56
    %v274 = vunpack.c.l.b16 %v57
    %v275 = vunpack.c.h.b16 %v57
    %v276 = vunpack.c.l.b16 %v58
    %v277 = vunpack.c.h.b16 %v58
    %v278 = vunpack.c.l.b16 %v59
    %v279 = vunpack.c.h.b16 %v59
    %v280 = vunpack.c.l.b16 %v60
    %v281 = vunpack.c.h.b16 %v60
    %v282 = vunpack.c.l.b16 %v61
    %v283 = vunpack.c.h.b16 %v61
    %v284 = vunpack.c.l.b16 %v62
    %v285 = vunpack.c.h.b16 %v62
    %v286 = vunpack.c.l.b16 %v63
    %v287 = vunpack.c.h.b16 %v63
    %v288 = vunpack.c.l.b16 %v64
    %v289 = vunpack.c.h.b16 %v64
    %v290 = vunpack.c.l.b16 %v65
    %v291 = vunpack.c.h.b16 %v65
    %v292 = vunpack.c.l.b16 %v66
    %v293 = vunpack.c.h.b16 %v66
    %v294 = vunpack.c.l.b16 %v67
    %v295 = vunpack.c.h.b16 %v67
    %v296 = vunpack.c.l.b16 %v68
    %v297 = vunpack.c.h.b16 %v68
    %v298 = vunpack.c.l.b16 %v69
    %v299 = vunpack.c.h.b16 %v69
    %v300 = vunpack.c.l.b16 %v70
    %v301 = vunpack.c.h.b16 %v70
    %v302 = vunpack.c.l.b16 %v71
    %v303 = vunpack.c.h.b16 %v71
    %v304 = vunpack.c.l.b16 %v72
    %v305 = vunpack.c.h.b16 %v72
    %v306 = vunpack.c.l.b16 %v73
    %v307 = vunpack.c.h.b16 %v73
    %v308 = vunpack.c.l.b16 %v74
    %v309 = vunpack.c.h.b16 %v74
    %v310 = vunpack.c.l.b16 %v75
    %v311 = vunpack.c.h.b16 %v75
    %v312 = vunpack.c.l.b16 %v76
    %v313 = vunpack.c.h.b16 %v76
    %v314 = vunpack.c.l.b16 %v77
    %v315 = vunpack.c.h.b16 %v77
    %v316 = vunpack.c.l.b16 %v78
    %v317 = vunpack.c.h.b16 %v78
    %v318 = vunpack.c.l.b16 %v79
    %v319 = vunpack.c.h.b16 %v79
    %v320 = vunpack.c.l.b16 %v80
    %v321 = vunpack.c.h.b16 %v80
    %v322 = vunpack.c.l.b16 %v81
    %v323 = vunpack.c.h.b16 %v81
    %v324 = vunpack.c.l.b16 %v82
    %v325 = vunpack.c.h.b16 %v82
    %v326 = vunpack.c.l.b16 %v83
    %v327 = vunpack.c.h.b16 %v83
    %v328 = vunpack.c.l.b16 %v84
    %v329 = vunpack.c.h.b16 %v84
    %v330 = vunpack.c.l.b16 %v85
    %v331 = vunpack.c.h.b16 %v85
    %v332 = vunpack.c.l.b16 %v86
    %v333 = vunpack.c.h.b16 %v86
    %v334 = vunpack.c.l.b16 %v87
    %v335 = vunpack.c.h.b16 %v87
    %v336 = vunpack.c.l.b16 %v88
    %v337 = vunpack.c.h.b16 %v88
    %v338 = vunpack.c.l.b16 %v89
    %v339 = vunpack.c.h.b16 %v89
    %v340 = vunpack.c.l.b16 %v90
    %v341 = vunpack.c.h.b16 %v90
    %v342 = vunpack.c.l.b16 %v91
    %v343 = vunpack.c.h.b16 %v91
    %v344 = vunpack.c.l.b16 %v92
    %v345 = vunpack.c.h.b16 %v92
    %v346 = vunpack.c.l.b16 %v93
    %v347 = vunpack.c.h.b16 %v93
    %v348 = vunpack.c.l.b16 %v94
    %v349 = vunpack.c.h.b16 %v94
    %v350 = vunpack.c.l.b16 %v95
    %v351 = vunpack.c.h.b16 %v95
    %v352 = vunpack.c.l.b16 %v96
    %v353 = vunpack.c.h.b16 %v96
    %v354 = vunpack.c.l.b16 %v97
    %v355 = vunpack.c.h.b16 %v97
    %v356 = vunpack.c.l.b16 %v98
    %v357 = vunpack.c.h.b16 %v98
    %v358 = vunpack.c.l.b16 %v99
    %v359 = vunpack.c.h.b16 %v99
    %v360 = vunpack.c.l.b16 %v100
    %v361 = vunpack.c.h.b16 %v100
    %v362 = vunpack.c.l.b16 %v101
    %v363 = vunpack.c.h.b16 %v101
    %v364 = vunpack.c.l.b16 %v102
    %v365 = vunpack.c.h.b16 %v102
    %v366 = vunpack.c.l.b16 %v103
    %v367 = vunpack.c.h.b16 %v103
    %v368 = vunpack.c.l.b16 %v104
    %v369 = vunpack.c.h.b16 %v104
    %v370 = vunpack.c.l.b16 %v105
    %v371 = vunpack.c.h.b16 %v105
    %v372 = vunpack.c.l.b16 %v106
    %v373 = vunpack.c.h.b16 %v106
    %v374 = vunpack.c.l.b16 %v107
    %v375 = vunpack.c.h.b16 %v107
    %v376 = vunpack.c.l.b16 %v108
    %v377 = vunpack.c.h.b16 %v108
    %v378 = vunpack.c.l.b16 %v109
    %v379 = vunpack.c.h.b16 %v109
    %v380 = vunpack.c.l.b16 %v110
    %v381 = vunpack.c.h.b16 %v110
    %v382 = vunpack.c.l.b16 %v111
    %v383 = vunpack.c.h.b16 %v111
    %v384 = vunpack.c.l.b16 %v112
    %v385 = vunpack.c.h.b16 %v112
    %v386 = vunpack.c.l.b16 %v113
    %v387 = vunpack.c.h.b16 %v113
    %v388 = vunpack.c.l.b16 %v114
    %v389 = vunpack.c.h.b16 %v114
    %v390 = vunpack.c.l.b16 %v115
    %v391 = vunpack.c.h.b16 %v115
    %v392 = vunpack.c.l.b16 %v116
    %v393 = vunpack.c.h.b16 %v116
    %v394 = vunpack.c.l.b16 %v117
    %v395 = vunpack.c.h.b16 %v117
    %v396 = vunpack.c.l.b16 %v118
    %v397 = vunpack.c.h.b16 %v118
    %v398 = vunpack.c.l.b16 %v119
    %v399 = vunpack.c.h.b16 %v119
    %v400 = vunpack.c.l.b16 %v120
    %v401 = vunpack.c.h.b16 %v120
    %v402 = vunpack.c.l.b16 %v121
    %v403 = vunpack.c.h.b16 %v121
    %v404 = vunpack.c.l.b16 %v122
    %v405 = vunpack.c.h.b16 %v122
    %v406 = vunpack.c.l.b16 %v123
    %v407 = vunpack.c.h.b16 %v123
    %v408 = vunpack.c.l.b16 %v124
    %v409 = vunpack.c.h.b16 %v124
    %v410 = vunpack.c.l.b16 %v125
    %v411 = vunpack.c.h.b16 %v125
    %v412 = vunpack.c.l.b16 %v126
    %v413 = vunpack.c.h.b16 %v126
    %v414 = vunpack.c.l.b16 %v127
    %v415 = vunpack.c.h.b16 %v127
    %v416 = vunpack.c.l.b16 %v128
    %v417 = vunpack.c.h.b16 %v128
    %v418 = vunpack.c.l.b16 %v129
    %v419 = vunpack.c.h.b16 %v129
    %v420 = vunpack.c.l.b16 %v130
    %v421 = vunpack.c.h.b16 %v130
    %v422 = vunpack.c.l.b16 %v131
    %v423 = vunpack.c.h.b16 %v131
    %v424 = vunpack.c.l.b16 %v132
    %v425 = vunpack.c.h.b16 %v132
    %v426 = vunpack.c.l.b16 %v133
    %v427 = vunpack.c.h.b16 %v133
    %v428 = vunpack.c.l.b16 %v134
    %v429 = vunpack.c.h.b16 %v134
    %v430 = vunpack.c.l.b16 %v135
    %v431 = vunpack.c.h.b16 %v135
    %v432 = vunpack.c.l.b16 %v136
    %v433 = vunpack.c.h.b16 %v136
    %v434 = vunpack.c.l.b16 %v137
    %v435 = vunpack.c.h.b16 %v137
    %v436 = vunpack.c.l.b16 %v138
    %v437 = vunpack.c.h.b16 %v138
    %v438 = vunpack.c.l.b16 %v139
    %v439 = vunpack.c.h.b16 %v139
    %v440 = vunpack.c.l.b16 %v140
    %v441 = vunpack.c.h.b16 %v140
    %v442 = vunpack.c.l.b16 %v141
    %v443 = vunpack.c.h.b16 %v141
    %v444 = vunpack.c.l.b16 %v142
    %v445 = vunpack.c.h.b16 %v142
    %v446 = vunpack.c.l.b16 %v143
    %v447 = vunpack.c.h.b16 %v143
    %v448 = vunpack.c.l.b16 %v144
    %v449 = vunpack.c.h.b16 %v144
    %v450 = vunpack.c.l.b16 %v145
    %v451 = vunpack.c.h.b16 %v145
    %v452 = vpack.c.b16 %v258, %v256
    %v453 = vpack.c.b16 %v259, %v257
    %v454 = vpack.c.b16 %v262, %v260
    %v455 = vpack.c.b16 %v263, %v261
    %v456 = vpack.c.b16 %v266, %v264
    %v457 = vpack.c.b16 %v267, %v265
    %v458 = vpack.c.b16 %v270, %v268
    %v459 = vpack.c.b16 %v271, %v269
    %v460 = vpack.c.b16 %v274, %v272
    %v461 = vpack.c.b16 %v275, %v273
    %v462 = vpack.c.b16 %v278, %v276
    %v463 = vpack.c.b16 %v279, %v277
    %v464 = vpack.c.b16 %v282, %v280
    %v465 = vpack.c.b16 %v283, %v281
    %v466 = vpack.c.b16 %v286, %v284
    %v467 = vpack.c.b16 %v287, %v285
    %v468 = vpack.c.b16 %v290, %v288
    %v469 = vpack.c.b16 %v291, %v289
    %v470 = vpack.c.b16 %v294, %v292
    %v471 = vpack.c.b16 %v295, %v293
    %v472 = vpack.c.b16 %v298, %v296
    %v473 = vpack.c.b16 %v299, %v297
    %v474 = vpack.c.b16 %v302, %v300
    %v475 = vpack.c.b16 %v303, %v301
    %v476 = vpack.c.b16 %v306, %v304
    %v477 = vpack.c.b16 %v307, %v305
    %v478 = vpack.c.b16 %v310, %v308
    %v479 = vpack.c.b16 %v311, %v309
    %v480 = vpack.c.b16 %v314, %v312
    %v481 = vpack.c.b16 %v315, %v313
    %v482 = vpack.c.b16 %v318, %v316
    %v483 = vpack.c.b16 %v319, %v317
    %v484 = vpack.c.b16 %v322, %v320
    %v485 = vpack.c.b16 %v323, %v321
    %v486 = vpack.c.b16 %v326, %v324
    %v487 = vpack.c.b16 %v327, %v325
    %v488 = vpack.c.b16 %v330, %v328
    %v489 = vpack.c.b16 %v331, %v329
    %v490 = vpack.c.b16 %v334, %v332
    %v491 = vpack.c.b16 %v335, %v333
    %v492 = vpack.c.b16 %v338, %v336
    %v493 = vpack.c.b16 %v339, %v337
    %v494 = vpack.c.b16 %v342, %v340
    %v495 = vpack.c.b16 %v343, %v341
    %v496 = vpack.c.b16 %v346, %v344
    %v497 = vpack.c.b16 %v347, %v345
    %v498 = vpack.c.b16 %v350, %v348
    %v499 = vpack.c.b16 %v351, %v349
    %v500 = vpack.c.b16 %v354, %v352
    %v501 = vpack.c.b16 %v355, %v353
    %v502 = vpack.c.b16 %v358, %v356
    %v503 = vpack.c.b16 %v359, %v357
    %v504 = vpack.c.b16 %v362, %v360
    %v505 = vpack.c.b16 %v363, %v361
    %v506 = vpack.c.b16 %v366, %v364
    %v507 = vpack.c.b16 %v367, %v365
    %v508 = vpack.c.b16 %v370, %v368
    %v509 = vpack.c.b16 %v371, %v369
    %v510 = vpack.c.b16 %v374, %v372
    %v511 = vpack.c.b16 %v375, %v373
    %v512 = vpack.c.b16 %v378, %v376
    %v513 = vpack.c.b16 %v379, %v377
    %v514 = vpack.c.b16 %v382, %v380
    %v515 = vpack.c.b16 %v383, %v381
    %v516 = vpack.c.b16 %v386, %v384
    %v517 = vpack.c.b16 %v387, %v385
    %v518 = vpack.c.b16 %v390, %v388
    %v519 = vpack.c.b16 %v391, %v389
    %v520 = vpack.c.b16 %v394, %v392
    %v521 = vpack.c.b16 %v395, %v393
    %v522 = vpack.c.b16 %v398, %v396
    %v523 = vpack.c.b16 %v399, %v397
    %v524 = vpack.c.b16 %v402, %v400
    %v525 = vpack.c.b16 %v403, %v401
    %v526 = vpack.c.b16 %v406, %v404
    %v527 = vpack.c.b16 %v407, %v405
    %v528 = vpack.c.b16 %v410, %v408
    %v529 = vpack.c.b16 %v411, %v409
    %v530 = vpack.c.b16 %v414, %v412
    %v531 = vpack.c.b16 %v415, %v413
    %v532 = vpack.c.b16 %v418, %v416
    %v533 = vpack.c.b16 %v419, %v417
    %v534 = vpack.c.b16 %v422, %v420
    %v535 = vpack.c.b16 %v423, %v421
    %v536 = vpack.c.b16 %v426, %v424
    %v537 = vpack.c.b16 %v427, %v425
    %v538 = vpack.c.b16 %v430, %v428
    %v539 = vpack.c.b16 %v431, %v429
    %v540 = vpack.c.b16 %v434, %v432
    %v541 = vpack.c.b16 %v435, %v433
    %v542 = vpack.c.b16 %v438, %v436
    %v543 = vpack.c.b16 %v439, %v437
    %v544 = vpack.c.b16 %v442, %v440
    %v545 = vpack.c.b16 %v443, %v441
    %v546 = vpack.c.b16 %v446, %v444
    %v547 = vpack.c.b16 %v447, %v445
    %v548 = vpack.c.b16 %v450, %v448
    %v549 = vpack.c.b16 %v451, %v449
    %vm648 = vcmask 130048
    %v650 = vsel %vm648, %v47, 0
    %652 = vmatprep.subr.bf16.mxu0 %v453
    %653 = vmatpush1.bf16.msra.mxu0 %v452
    %654 = vmatprep.subr.bf16.mxu0 %v455
    %655 = vmatpush1.bf16.msra.mxu0 %v454
    %656 = vmatprep.subr.bf16.mxu0 %v457
    %657 = vmatpush1.bf16.msra.mxu0 %v456
    %658 = vmatprep.subr.bf16.mxu0 %v459
    %659 = vmatpush1.bf16.msra.mxu0 %v458
    %660 = vmatprep.subr.bf16.mxu0 %v461
    %661 = vmatpush1.bf16.msra.mxu0 %v460
    %662 = vmatprep.subr.bf16.mxu0 %v463
    %663 = vmatpush1.bf16.msra.mxu0 %v462
    %664 = vmatprep.subr.bf16.mxu0 %v465
    %665 = vmatpush1.bf16.msra.mxu0 %v464
    %666 = vmatprep.subr.bf16.mxu0 %v467
    %667 = vmatpush1.bf16.msra.mxu0 %v466
    %668 = vmatprep.subr.bf16.mxu0 %v469
    %669 = vmatpush1.bf16.msra.mxu0 %v468
    %670 = vmatprep.subr.bf16.mxu0 %v471
    %671 = vmatpush1.bf16.msra.mxu0 %v470
    %672 = vmatprep.subr.bf16.mxu0 %v473
    %673 = vmatpush1.bf16.msra.mxu0 %v472
    %674 = vmatprep.subr.bf16.mxu0 %v475
    %675 = vmatpush1.bf16.msra.mxu0 %v474
    %676 = vmatprep.subr.bf16.mxu0 %v477
    %677 = vmatpush1.bf16.msra.mxu0 %v476
    %678 = vmatprep.subr.bf16.mxu0 %v479
    %679 = vmatpush1.bf16.msra.mxu0 %v478
    %680 = vmatprep.subr.bf16.mxu0 %v481
    %681 = vmatpush1.bf16.msra.mxu0 %v480
    %682 = vmatprep.subr.bf16.mxu0 %v483
    %683 = vmatpush1.bf16.msra.mxu0 %v482
    %684 = vmatprep.mubr.bf16.mxu0 %v42
    %685 = vmatmul.mubr.bf16.gmra.mrb[0].mxu0 %v41
    %v686 = vpop.f32.mrb[0].mxu0
    %v687 = vadd.f32 %v151, %v686
    %v688 = vpop.f32.mrb[0].mxu0
    %v689 = vadd.f32 %v155, %v688
    %v690 = vpop.f32.mrb[0].mxu0
    %v691 = vpop.f32.mrb[0].mxu0
    %692 = vdwg.mxu0
    %693 = vmatprep.subr.bf16.mxu0 %v485
    %694 = vmatpush1.bf16.msra.mxu0 %v484
    %695 = vmatprep.subr.bf16.mxu0 %v487
    %696 = vmatpush1.bf16.msra.mxu0 %v486
    %697 = vmatprep.subr.bf16.mxu0 %v489
    %698 = vmatpush1.bf16.msra.mxu0 %v488
    %699 = vmatprep.subr.bf16.mxu0 %v491
    %700 = vmatpush1.bf16.msra.mxu0 %v490
    %701 = vmatprep.subr.bf16.mxu0 %v493
    %702 = vmatpush1.bf16.msra.mxu0 %v492
    %703 = vmatprep.subr.bf16.mxu0 %v495
    %704 = vmatpush1.bf16.msra.mxu0 %v494
    %705 = vmatprep.subr.bf16.mxu0 %v497
    %706 = vmatpush1.bf16.msra.mxu0 %v496
    %707 = vmatprep.subr.bf16.mxu0 %v499
    %708 = vmatpush1.bf16.msra.mxu0 %v498
    %709 = vmatprep.subr.bf16.mxu0 %v501
    %710 = vmatpush1.bf16.msra.mxu0 %v500
    %711 = vmatprep.subr.bf16.mxu0 %v503
    %712 = vmatpush1.bf16.msra.mxu0 %v502
    %713 = vmatprep.subr.bf16.mxu0 %v505
    %714 = vmatpush1.bf16.msra.mxu0 %v504
    %715 = vmatprep.subr.bf16.mxu0 %v507
    %716 = vmatpush1.bf16.msra.mxu0 %v506
    %717 = vmatprep.subr.bf16.mxu0 %v509
    %718 = vmatpush1.bf16.msra.mxu0 %v508
    %719 = vmatprep.subr.bf16.mxu0 %v511
    %720 = vmatpush1.bf16.msra.mxu0 %v510
    %721 = vmatprep.subr.bf16.mxu0 %v513
    %722 = vmatpush1.bf16.msra.mxu0 %v512
    %723 = vmatprep.subr.bf16.mxu0 %v515
    %724 = vmatpush1.bf16.msra.mxu0 %v514
    %725 = vmatprep.mubr.bf16.mxu0 %v44
    %726 = vmatmul.mubr.bf16.gmra.mrb[0].mxu0 %v43
    %v727 = vpop.f32.mrb[0].mxu0
    %v728 = vadd.f32 %v687, %v727
    %v729 = vpop.f32.mrb[0].mxu0
    %v730 = vadd.f32 %v689, %v729
    %v731 = vpop.f32.mrb[0].mxu0
    %v732 = vpop.f32.mrb[0].mxu0
    %733 = vdwg.mxu0
    %734 = vmatprep.subr.bf16.mxu0 %v517
    %735 = vmatpush1.bf16.msra.mxu0 %v516
    %736 = vmatprep.subr.bf16.mxu0 %v519
    %737 = vmatpush1.bf16.msra.mxu0 %v518
    %738 = vmatprep.subr.bf16.mxu0 %v521
    %739 = vmatpush1.bf16.msra.mxu0 %v520
    %740 = vmatprep.subr.bf16.mxu0 %v523
    %741 = vmatpush1.bf16.msra.mxu0 %v522
    %742 = vmatprep.subr.bf16.mxu0 %v525
    %743 = vmatpush1.bf16.msra.mxu0 %v524
    %744 = vmatprep.subr.bf16.mxu0 %v527
    %745 = vmatpush1.bf16.msra.mxu0 %v526
    %746 = vmatprep.subr.bf16.mxu0 %v529
    %747 = vmatpush1.bf16.msra.mxu0 %v528
    %748 = vmatprep.subr.bf16.mxu0 %v531
    %749 = vmatpush1.bf16.msra.mxu0 %v530
    %750 = vmatprep.subr.bf16.mxu0 %v533
    %751 = vmatpush1.bf16.msra.mxu0 %v532
    %752 = vmatprep.subr.bf16.mxu0 %v535
    %753 = vmatpush1.bf16.msra.mxu0 %v534
    %754 = vmatprep.subr.bf16.mxu0 %v537
    %755 = vmatpush1.bf16.msra.mxu0 %v536
    %756 = vmatprep.subr.bf16.mxu0 %v539
    %757 = vmatpush1.bf16.msra.mxu0 %v538
    %758 = vmatprep.subr.bf16.mxu0 %v541
    %759 = vmatpush1.bf16.msra.mxu0 %v540
    %760 = vmatprep.subr.bf16.mxu0 %v543
    %761 = vmatpush1.bf16.msra.mxu0 %v542
    %762 = vmatprep.subr.bf16.mxu0 %v545
    %763 = vmatpush1.bf16.msra.mxu0 %v544
    %764 = vmatprep.subr.bf16.mxu0 %v547
    %765 = vmatpush1.bf16.msra.mxu0 %v546
    %766 = vmatprep.mubr.bf16.mxu0 %v46
    %767 = vmatmul.mubr.bf16.gmra.mrb[0].mxu0 %v45
    %v768 = vpop.f32.mrb[0].mxu0
    %v769 = vadd.f32 %v728, %v768
    %v770 = vpop.f32.mrb[0].mxu0
    %v771 = vadd.f32 %v730, %v770
    %v772 = vpop.f32.mrb[0].mxu0
    %v773 = vpop.f32.mrb[0].mxu0
    %774 = vdwg.mxu0
    %775 = vmatprep.subr.bf16.mxu0 %v549
    %776 = vmatpush1.bf16.msra.mxu0 %v548
    %777 = vmatprep.subr.bf16.mxu0 0
    %778 = vmatpush1.bf16.msra.mxu0 0
    %779 = vmatprep.subr.bf16.mxu0 0
    %780 = vmatpush1.bf16.msra.mxu0 0
    %781 = vmatprep.subr.bf16.mxu0 0
    %782 = vmatpush1.bf16.msra.mxu0 0
    %783 = vmatprep.subr.bf16.mxu0 0
    %784 = vmatpush1.bf16.msra.mxu0 0
    %785 = vmatprep.subr.bf16.mxu0 0
    %786 = vmatpush1.bf16.msra.mxu0 0
    %787 = vmatprep.subr.bf16.mxu0 0
    %788 = vmatpush1.bf16.msra.mxu0 0
    %789 = vmatprep.subr.bf16.mxu0 0
    %790 = vmatpush1.bf16.msra.mxu0 0
    %791 = vmatprep.subr.bf16.mxu0 0
    %792 = vmatpush1.bf16.msra.mxu0 0
    %793 = vmatprep.subr.bf16.mxu0 0
    %794 = vmatpush1.bf16.msra.mxu0 0
    %795 = vmatprep.subr.bf16.mxu0 0
    %796 = vmatpush1.bf16.msra.mxu0 0
    %797 = vmatprep.subr.bf16.mxu0 0
    %798 = vmatpush1.bf16.msra.mxu0 0
    %799 = vmatprep.subr.bf16.mxu0 0
    %800 = vmatpush1.bf16.msra.mxu0 0
    %801 = vmatprep.subr.bf16.mxu0 0
    %802 = vmatpush1.bf16.msra.mxu0 0
    %803 = vmatprep.subr.bf16.mxu0 0
    %804 = vmatpush1.bf16.msra.mxu0 0
    %805 = vmatprep.subr.bf16.mxu0 0
    %806 = vmatpush1.bf16.msra.mxu0 0
    %807 = vmatprep.mubr.bf16.mxu0 0
    %808 = vmatmul.mubr.bf16.gmra.mrb[0].mxu0 %v650
    %v809 = vpop.f32.mrb[0].mxu0
    %v810 = vadd.f32 %v769, %v809
    %v811 = vpop.f32.mrb[0].mxu0
    %v812 = vadd.f32 %v771, %v811
    %v813 = vpop.f32.mrb[0].mxu0
    %v814 = vpop.f32.mrb[0].mxu0
    %815 = vdwg.mxu0
    %v816 = vmax.f32 %v810, 0.0
    %v817 = vmax.f32 %v812, 0.0
    %v818 = vpack.c.bf16 %v816, %v816
    %v819 = vpack.c.bf16 %v817, %v817
    %v820 = vld [vmem:[%s3] sm:$0xf]
    %v821 = vld [vmem:[%s3 + $0x4] sm:$0xf]
    %v822 = vld [vmem:[%s3 + $0x8] sm:$0xf]
    %v823 = vld [vmem:[%s3 + $0xc] sm:$0xf]
    %v824 = vld [vmem:[%s3 + $0x10] sm:$0xf]
    %v825 = vld [vmem:[%s3 + $0x14] sm:$0xf]
    %v826 = vld [vmem:[%s3 + $0x18] sm:$0xf]
    %v827 = vld [vmem:[%s3 + $0x1c] sm:$0xf]
    %v828 = vld [vmem:[%s3 + $0x20] sm:$0xf]
    %v829 = vld [vmem:[%s3 + $0x24] sm:$0xf]
    %v830 = vld [vmem:[%s3 + $0x28] sm:$0xf]
    %v831 = vld [vmem:[%s3 + $0x2c] sm:$0xf]
    %v832 = vld [vmem:[%s3 + $0x30] sm:$0xf]
    %v833 = vld [vmem:[%s3 + $0x34] sm:$0xf]
    %v834 = vld [vmem:[%s3 + $0x38] sm:$0xf]
    %v835 = vld [vmem:[%s3 + $0x3c] sm:$0xf]
    %v836 = vld [vmem:[%s3 + $0x40] sm:$0xf]
    %v837 = vld [vmem:[%s3 + $0x44] sm:$0xf]
    %v838 = vld [vmem:[%s3 + $0x48] sm:$0xf]
    %v839 = vld [vmem:[%s3 + $0x4c] sm:$0xf]
    %v840 = vld [vmem:[%s3 + $0x50] sm:$0xf]
    %v841 = vld [vmem:[%s3 + $0x54] sm:$0xf]
    %v842 = vld [vmem:[%s3 + $0x58] sm:$0xf]
    %v843 = vld [vmem:[%s3 + $0x5c] sm:$0xf]
    %v844 = vld [vmem:[%s3 + $0x60] sm:$0xf]
    %v845 = vld [vmem:[%s3 + $0x64] sm:$0xf]
    %v846 = vld [vmem:[%s3 + $0x68] sm:$0xf]
    %v847 = vld [vmem:[%s3 + $0x6c] sm:$0xf]
    %v848 = vld [vmem:[%s3 + $0x70] sm:$0xf]
    %v849 = vld [vmem:[%s3 + $0x74] sm:$0xf]
    %v850 = vld [vmem:[%s3 + $0x78] sm:$0xf]
    %v851 = vld [vmem:[%s3 + $0x7c] sm:$0xf]
    %v852 = vld [vmem:[%s4] sm:$0x1]
    %v854 = vlaneseq
    %v855 = vshrl.u32 %v854, 7
    %v856 = vsub.s32 0, %v855
    %v857 = vrot.slane %v852, %v856
    %v891 = vunpack.c.l.b16 %v820
    %v892 = vunpack.c.l.b16 %v821
    %v893 = vunpack.c.l.b16 %v822
    %v894 = vunpack.c.l.b16 %v823
    %v895 = vunpack.c.l.b16 %v824
    %v896 = vunpack.c.l.b16 %v825
    %v897 = vunpack.c.l.b16 %v826
    %v898 = vunpack.c.l.b16 %v827
    %v899 = vunpack.c.l.b16 %v828
    %v900 = vunpack.c.l.b16 %v829
    %v901 = vunpack.c.l.b16 %v830
    %v902 = vunpack.c.l.b16 %v831
    %v903 = vunpack.c.l.b16 %v832
    %v904 = vunpack.c.l.b16 %v833
    %v905 = vunpack.c.l.b16 %v834
    %v906 = vunpack.c.l.b16 %v835
    %v907 = vunpack.c.l.b16 %v836
    %v908 = vunpack.c.l.b16 %v837
    %v909 = vunpack.c.l.b16 %v838
    %v910 = vunpack.c.l.b16 %v839
    %v911 = vunpack.c.l.b16 %v840
    %v912 = vunpack.c.l.b16 %v841
    %v913 = vunpack.c.l.b16 %v842
    %v914 = vunpack.c.l.b16 %v843
    %v915 = vunpack.c.l.b16 %v844
    %v916 = vunpack.c.l.b16 %v845
    %v917 = vunpack.c.l.b16 %v846
    %v918 = vunpack.c.l.b16 %v847
    %v919 = vunpack.c.l.b16 %v848
    %v920 = vunpack.c.l.b16 %v849
    %v921 = vunpack.c.l.b16 %v850
    %v922 = vunpack.c.l.b16 %v851
    %v923 = vpack.c.b16 %v892, %v891
    %v924 = vpack.c.b16 %v894, %v893
    %v925 = vpack.c.b16 %v896, %v895
    %v926 = vpack.c.b16 %v898, %v897
    %v927 = vpack.c.b16 %v900, %v899
    %v928 = vpack.c.b16 %v902, %v901
    %v929 = vpack.c.b16 %v904, %v903
    %v930 = vpack.c.b16 %v906, %v905
    %v931 = vpack.c.b16 %v908, %v907
    %v932 = vpack.c.b16 %v910, %v909
    %v933 = vpack.c.b16 %v912, %v911
    %v934 = vpack.c.b16 %v914, %v913
    %v935 = vpack.c.b16 %v916, %v915
    %v936 = vpack.c.b16 %v918, %v917
    %v937 = vpack.c.b16 %v920, %v919
    %v938 = vpack.c.b16 %v922, %v921
    %955 = vmatprep.subr.bf16.mxu0 0
    %956 = vmatpush1.bf16.msra.mxu0 %v923
    %957 = vmatprep.subr.bf16.mxu0 0
    %958 = vmatpush1.bf16.msra.mxu0 %v924
    %959 = vmatprep.subr.bf16.mxu0 0
    %960 = vmatpush1.bf16.msra.mxu0 %v925
    %961 = vmatprep.subr.bf16.mxu0 0
    %962 = vmatpush1.bf16.msra.mxu0 %v926
    %963 = vmatprep.subr.bf16.mxu0 0
    %964 = vmatpush1.bf16.msra.mxu0 %v927
    %965 = vmatprep.subr.bf16.mxu0 0
    %966 = vmatpush1.bf16.msra.mxu0 %v928
    %967 = vmatprep.subr.bf16.mxu0 0
    %968 = vmatpush1.bf16.msra.mxu0 %v929
    %969 = vmatprep.subr.bf16.mxu0 0
    %970 = vmatpush1.bf16.msra.mxu0 %v930
    %971 = vmatprep.subr.bf16.mxu0 0
    %972 = vmatpush1.bf16.msra.mxu0 %v931
    %973 = vmatprep.subr.bf16.mxu0 0
    %974 = vmatpush1.bf16.msra.mxu0 %v932
    %975 = vmatprep.subr.bf16.mxu0 0
    %976 = vmatpush1.bf16.msra.mxu0 %v933
    %977 = vmatprep.subr.bf16.mxu0 0
    %978 = vmatpush1.bf16.msra.mxu0 %v934
    %979 = vmatprep.subr.bf16.mxu0 0
    %980 = vmatpush1.bf16.msra.mxu0 %v935
    %981 = vmatprep.subr.bf16.mxu0 0
    %982 = vmatpush1.bf16.msra.mxu0 %v936
    %983 = vmatprep.subr.bf16.mxu0 0
    %984 = vmatpush1.bf16.msra.mxu0 %v937
    %985 = vmatprep.subr.bf16.mxu0 0
    %986 = vmatpush1.bf16.msra.mxu0 %v938
    %987 = vmatprep.mubr.bf16.mxu0 %v819
    %988 = vmatmul.mubr.bf16.gmra.mrb[0].mxu0 %v818
    %v989 = vpop.f32.mrb[0].mxu0
    %v990 = vadd.f32 %v857, %v989
    %v991 = vpop.f32.mrb[0].mxu0
    %v992 = vpop.f32.mrb[0].mxu0
    %v993 = vpop.f32.mrb[0].mxu0
    %994 = vdwg.mxu0
    %v995 = vpack.c.bf16 %v990, %v990
    %v996 = vld [vmem:[%s5] sm:$0xff]
    %v997 = vld [vmem:[%s5 + $0x8] sm:$0xff]
    %v998 = vld [vmem:[%s5 + $0x10] sm:$0xff]
    %v999 = vld [vmem:[%s5 + $0x18] sm:$0xff]
    %v1000 = vld [vmem:[%s5 + $0x20] sm:$0xff]
    %v1001 = vld [vmem:[%s5 + $0x28] sm:$0xff]
    %v1002 = vld [vmem:[%s5 + $0x30] sm:$0xff]
    %v1003 = vld [vmem:[%s5 + $0x38] sm:$0xff]
    %v1004 = vld [vmem:[%s6] sm:$0x3]
    %v1006 = vlaneseq
    %v1007 = vshrl.u32 %v1006, 7
    %v1008 = vsub.s32 0, %v1007
    %v1009 = vrot.slane %v1004, %v1008
    %v1010 = vlaneseq
    %v1011 = vshrl.u32 %v1010, 7
    %v1012 = vsub.s32 1, %v1011
    %v1013 = vrot.slane %v1004, %v1012
    %v1024 = vunpack.c.l.b16 %v996
    %v1025 = vunpack.c.h.b16 %v996
    %v1026 = vunpack.c.l.b16 %v997
    %v1027 = vunpack.c.h.b16 %v997
    %v1028 = vunpack.c.l.b16 %v998
    %v1029 = vunpack.c.h.b16 %v998
    %v1030 = vunpack.c.l.b16 %v999
    %v1031 = vunpack.c.h.b16 %v999
    %v1032 = vunpack.c.l.b16 %v1000
    %v1033 = vunpack.c.h.b16 %v1000
    %v1034 = vunpack.c.l.b16 %v1001
    %v1035 = vunpack.c.h.b16 %v1001
    %v1036 = vunpack.c.l.b16 %v1002
    %v1037 = vunpack.c.h.b16 %v1002
    %v1038 = vunpack.c.l.b16 %v1003
    %v1039 = vunpack.c.h.b16 %v1003
    %v1040 = vpack.c.b16 %v1026, %v1024
    %v1041 = vpack.c.b16 %v1027, %v1025
    %v1042 = vpack.c.b16 %v1030, %v1028
    %v1043 = vpack.c.b16 %v1031, %v1029
    %v1044 = vpack.c.b16 %v1034, %v1032
    %v1045 = vpack.c.b16 %v1035, %v1033
    %v1046 = vpack.c.b16 %v1038, %v1036
    %v1047 = vpack.c.b16 %v1039, %v1037
    %vm1056 = vcmask 523264
    %v1058 = vsel %vm1056, %v995, 0
    %1060 = vmatprep.subr.bf16.mxu0 %v1041
    %1061 = vmatpush1.bf16.msra.mxu0 %v1040
    %1062 = vmatprep.subr.bf16.mxu0 %v1043
    %1063 = vmatpush1.bf16.msra.mxu0 %v1042
    %1064 = vmatprep.subr.bf16.mxu0 %v1045
    %1065 = vmatpush1.bf16.msra.mxu0 %v1044
    %1066 = vmatprep.subr.bf16.mxu0 %v1047
    %1067 = vmatpush1.bf16.msra.mxu0 %v1046
    %1068 = vmatprep.subr.bf16.mxu0 0
    %1069 = vmatpush1.bf16.msra.mxu0 0
    %1070 = vmatprep.subr.bf16.mxu0 0
    %1071 = vmatpush1.bf16.msra.mxu0 0
    %1072 = vmatprep.subr.bf16.mxu0 0
    %1073 = vmatpush1.bf16.msra.mxu0 0
    %1074 = vmatprep.subr.bf16.mxu0 0
    %1075 = vmatpush1.bf16.msra.mxu0 0
    %1076 = vmatprep.subr.bf16.mxu0 0
    %1077 = vmatpush1.bf16.msra.mxu0 0
    %1078 = vmatprep.subr.bf16.mxu0 0
    %1079 = vmatpush1.bf16.msra.mxu0 0
    %1080 = vmatprep.subr.bf16.mxu0 0
    %1081 = vmatpush1.bf16.msra.mxu0 0
    %1082 = vmatprep.subr.bf16.mxu0 0
    %1083 = vmatpush1.bf16.msra.mxu0 0
    %1084 = vmatprep.subr.bf16.mxu0 0
    %1085 = vmatpush1.bf16.msra.mxu0 0
    %1086 = vmatprep.subr.bf16.mxu0 0
    %1087 = vmatpush1.bf16.msra.mxu0 0
    %1088 = vmatprep.subr.bf16.mxu0 0
    %1089 = vmatpush1.bf16.msra.mxu0 0
    %1090 = vmatprep.subr.bf16.mxu0 0
    %1091 = vmatpush1.bf16.msra.mxu0 0
    %1092 = vmatprep.mubr.bf16.mxu0 0
    %1093 = vmatmul.mubr.bf16.gmra.mrb[0].mxu0 %v1058
    %v1094 = vpop.f32.mrb[0].mxu0
    %v1095 = vadd.f32 %v1009, %v1094
    %v1096 = vpop.f32.mrb[0].mxu0
    %v1097 = vadd.f32 %v1013, %v1096
    %v1098 = vpop.f32.mrb[0].mxu0
    %v1099 = vpop.f32.mrb[0].mxu0
    %1100 = vdwg.mxu0
    %v1101 = vmax.f32 %v1095, 0.0
    %v1102 = vmax.f32 %v1097, 0.0
    %v1103 = vpack.c.bf16 %v1101, %v1101
    %v1104 = vpack.c.bf16 %v1102, %v1102
    %v1105 = vld [vmem:[%s7] sm:$0xff]
    %v1106 = vld [vmem:[%s7 + $0x8] sm:$0xff]
    %v1107 = vld [vmem:[%s7 + $0x10] sm:$0xff]
    %v1108 = vld [vmem:[%s7 + $0x18] sm:$0xf]
    %v1109 = vld [vmem:[%s7 + $0x1c] sm:$0xff]
    %v1110 = vld [vmem:[%s7 + $0x24] sm:$0xff]
    %v1111 = vld [vmem:[%s7 + $0x2c] sm:$0xff]
    %v1112 = vld [vmem:[%s7 + $0x34] sm:$0xf]
    %v1113 = vld [vmem:[%s7 + $0x38] sm:$0xff]
    %v1114 = vld [vmem:[%s7 + $0x40] sm:$0xff]
    %v1115 = vld [vmem:[%s7 + $0x48] sm:$0xff]
    %v1116 = vld [vmem:[%s7 + $0x50] sm:$0xf]
    %v1117 = vld [vmem:[%s7 + $0x54] sm:$0xff]
    %v1118 = vld [vmem:[%s7 + $0x5c] sm:$0xff]
    %v1119 = vld [vmem:[%s7 + $0x64] sm:$0xff]
    %v1120 = vld [vmem:[%s7 + $0x6c] sm:$0xf]
    %v1121 = vld [vmem:[%s7 + $0x70] sm:$0xff]
    %v1122 = vld [vmem:[%s7 + $0x78] sm:$0xff]
    %v1123 = vld [vmem:[%s7 + $0x80] sm:$0xff]
    %v1124 = vld [vmem:[%s7 + $0x88] sm:$0xf]
    %v1125 = vld [vmem:[%s7 + $0x8c] sm:$0xff]
    %v1126 = vld [vmem:[%s7 + $0x94] sm:$0xff]
    %v1127 = vld [vmem:[%s7 + $0x9c] sm:$0xff]
    %v1128 = vld [vmem:[%s7 + $0xa4] sm:$0xf]
    %v1129 = vld [vmem:[%s7 + $0xa8] sm:$0xff]
    %v1130 = vld [vmem:[%s7 + $0xb0] sm:$0xff]
    %v1131 = vld [vmem:[%s7 + $0xb8] sm:$0xff]
    %v1132 = vld [vmem:[%s7 + $0xc0] sm:$0xf]
    %v1133 = vld [vmem:[%s7 + $0xc4] sm:$0xff]
    %v1134 = vld [vmem:[%s7 + $0xcc] sm:$0xff]
    %v1135 = vld [vmem:[%s7 + $0xd4] sm:$0xff]
    %v1136 = vld [vmem:[%s7 + $0xdc] sm:$0xf]
    %v1137 = vld [vmem:[%s7 + $0xe0] sm:$0xff]
    %v1138 = vld [vmem:[%s7 + $0xe8] sm:$0xff]
    %v1139 = vld [vmem:[%s7 + $0xf0] sm:$0xff]
    %v1140 = vld [vmem:[%s7 + $0xf8] sm:$0xf]
    %v1141 = vld [vmem:[%s7 + $0xfc] sm:$0xff]
    %v1142 = vld [vmem:[%s7 + $0x104] sm:$0xff]
    %v1143 = vld [vmem:[%s7 + $0x10c] sm:$0xff]
    %v1144 = vld [vmem:[%s7 + $0x114] sm:$0xf]
    %v1145 = vld [vmem:[%s7 + $0x118] sm:$0xff]
    %v1146 = vld [vmem:[%s7 + $0x120] sm:$0xff]
    %v1147 = vld [vmem:[%s7 + $0x128] sm:$0xff]
    %v1148 = vld [vmem:[%s7 + $0x130] sm:$0xf]
    %v1149 = vld [vmem:[%s7 + $0x134] sm:$0xff]
    %v1150 = vld [vmem:[%s7 + $0x13c] sm:$0xff]
    %v1151 = vld [vmem:[%s7 + $0x144] sm:$0xff]
    %v1152 = vld [vmem:[%s7 + $0x14c] sm:$0xf]
    %v1153 = vld [vmem:[%s7 + $0x150] sm:$0xff]
    %v1154 = vld [vmem:[%s7 + $0x158] sm:$0xff]
    %v1155 = vld [vmem:[%s7 + $0x160] sm:$0xff]
    %v1156 = vld [vmem:[%s7 + $0x168] sm:$0xf]
    %v1157 = vld [vmem:[%s7 + $0x16c] sm:$0xff]
    %v1158 = vld [vmem:[%s7 + $0x174] sm:$0xff]
    %v1159 = vld [vmem:[%s7 + $0x17c] sm:$0xff]
    %v1160 = vld [vmem:[%s7 + $0x184] sm:$0xf]
    %v1161 = vld [vmem:[%s7 + $0x188] sm:$0xff]
    %v1162 = vld [vmem:[%s7 + $0x190] sm:$0xff]
    %v1163 = vld [vmem:[%s7 + $0x198] sm:$0xff]
    %v1164 = vld [vmem:[%s7 + $0x1a0] sm:$0xf]
    %v1165 = vld [vmem:[%s7 + $0x1a4] sm:$0xff]
    %v1166 = vld [vmem:[%s7 + $0x1ac] sm:$0xff]
    %v1167 = vld [vmem:[%s7 + $0x1b4] sm:$0xff]
    %v1168 = vld [vmem:[%s7 + $0x1bc] sm:$0xf]
    %v1169 = vld [vmem:[%s7 + $0x1c0] sm:$0xff]
    %v1170 = vld [vmem:[%s7 + $0x1c8] sm:$0xff]
    %v1171 = vld [vmem:[%s7 + $0x1d0] sm:$0xff]
    %v1172 = vld [vmem:[%s7 + $0x1d8] sm:$0xf]
    %v1173 = vld [vmem:[%s7 + $0x1dc] sm:$0xff]
    %v1174 = vld [vmem:[%s7 + $0x1e4] sm:$0xff]
    %v1175 = vld [vmem:[%s7 + $0x1ec] sm:$0xff]
    %v1176 = vld [vmem:[%s7 + $0x1f4] sm:$0xf]
    %v1177 = vld [vmem:[%s7 + $0x1f8] sm:$0xff]
    %v1178 = vld [vmem:[%s7 + $0x200] sm:$0xff]
    %v1179 = vld [vmem:[%s7 + $0x208] sm:$0xff]
    %v1180 = vld [vmem:[%s7 + $0x210] sm:$0xf]
    %v1181 = vld [vmem:[%s7 + $0x214] sm:$0xff]
    %v1182 = vld [vmem:[%s7 + $0x21c] sm:$0xff]
    %v1183 = vld [vmem:[%s7 + $0x224] sm:$0xff]
    %v1184 = vld [vmem:[%s7 + $0x22c] sm:$0xf]
    %v1185 = vld [vmem:[%s7 + $0x230] sm:$0xff]
    %v1186 = vld [vmem:[%s7 + $0x238] sm:$0xff]
    %v1187 = vld [vmem:[%s7 + $0x240] sm:$0xff]
    %v1188 = vld [vmem:[%s7 + $0x248] sm:$0xf]
    %v1189 = vld [vmem:[%s7 + $0x24c] sm:$0xff]
    %v1190 = vld [vmem:[%s7 + $0x254] sm:$0xff]
    %v1191 = vld [vmem:[%s7 + $0x25c] sm:$0xff]
    %v1192 = vld [vmem:[%s7 + $0x264] sm:$0xf]
    %v1193 = vld [vmem:[%s7 + $0x268] sm:$0xff]
    %v1194 = vld [vmem:[%s7 + $0x270] sm:$0xff]
    %v1195 = vld [vmem:[%s7 + $0x278] sm:$0xff]
    %v1196 = vld [vmem:[%s7 + $0x280] sm:$0xf]
    %v1197 = vld [vmem:[%s7 + $0x284] sm:$0xff]
    %v1198 = vld [vmem:[%s7 + $0x28c] sm:$0xff]
    %v1199 = vld [vmem:[%s7 + $0x294] sm:$0xff]
    %v1200 = vld [vmem:[%s7 + $0x29c] sm:$0xf]
    %v1201 = vld [vmem:[%s7 + $0x2a0] sm:$0xff]
    %v1202 = vld [vmem:[%s7 + $0x2a8] sm:$0xff]
    %v1203 = vld [vmem:[%s7 + $0x2b0] sm:$0xff]
    %v1204 = vld [vmem:[%s7 + $0x2b8] sm:$0xf]
    %v1205 = vld [vmem:[%s7 + $0x2bc] sm:$0xff]
    %v1206 = vld [vmem:[%s7 + $0x2c4] sm:$0xff]
    %v1207 = vld [vmem:[%s7 + $0x2cc] sm:$0xff]
    %v1208 = vld [vmem:[%s7 + $0x2d4] sm:$0xf]
    %v1209 = vld [vmem:[%s7 + $0x2d8] sm:$0xff]
    %v1210 = vld [vmem:[%s7 + $0x2e0] sm:$0xff]
    %v1211 = vld [vmem:[%s7 + $0x2e8] sm:$0xff]
    %v1212 = vld [vmem:[%s7 + $0x2f0] sm:$0xf]
    %v1213 = vld [vmem:[%s7 + $0x2f4] sm:$0xff]
    %v1214 = vld [vmem:[%s7 + $0x2fc] sm:$0xff]
    %v1215 = vld [vmem:[%s7 + $0x304] sm:$0xff]
    %v1216 = vld [vmem:[%s7 + $0x30c] sm:$0xf]
    %v1217 = vld [vmem:[%s7 + $0x310] sm:$0xff]
    %v1218 = vld [vmem:[%s7 + $0x318] sm:$0xff]
    %v1219 = vld [vmem:[%s7 + $0x320] sm:$0xff]
    %v1220 = vld [vmem:[%s7 + $0x328] sm:$0xf]
    %v1221 = vld [vmem:[%s7 + $0x32c] sm:$0xff]
    %v1222 = vld [vmem:[%s7 + $0x334] sm:$0xff]
    %v1223 = vld [vmem:[%s7 + $0x33c] sm:$0xff]
    %v1224 = vld [vmem:[%s7 + $0x344] sm:$0xf]
    %v1225 = vld [vmem:[%s7 + $0x348] sm:$0xff]
    %v1226 = vld [vmem:[%s7 + $0x350] sm:$0xff]
    %v1227 = vld [vmem:[%s7 + $0x358] sm:$0xff]
    %v1228 = vld [vmem:[%s7 + $0x360] sm:$0xf]
    %v1229 = vld [vmem:[%s7 + $0x364] sm:$0xff]
    %v1230 = vld [vmem:[%s7 + $0x36c] sm:$0xff]
    %v1231 = vld [vmem:[%s7 + $0x374] sm:$0xff]
    %v1232 = vld [vmem:[%s7 + $0x37c] sm:$0xf]
    %v1233 = vld [vmem:[%s8] sm:$0x7f]
    %v1235 = vlaneseq
    %v1236 = vshrl.u32 %v1235, 7
    %v1237 = vsub.s32 0, %v1236
    %v1238 = vrot.slane %v1233, %v1237
    %v1239 = vlaneseq
    %v1240 = vshrl.u32 %v1239, 7
    %v1241 = vsub.s32 1, %v1240
    %v1242 = vrot.slane %v1233, %v1241
    %v1243 = vlaneseq
    %v1244 = vshrl.u32 %v1243, 7
    %v1245 = vsub.s32 2, %v1244
    %v1246 = vrot.slane %v1233, %v1245
    %v1247 = vlaneseq
    %v1248 = vshrl.u32 %v1247, 7
    %v1249 = vsub.s32 3, %v1248
    %v1250 = vrot.slane %v1233, %v1249
    %v1251 = vlaneseq
    %v1252 = vshrl.u32 %v1251, 7
    %v1253 = vsub.s32 4, %v1252
    %v1254 = vrot.slane %v1233, %v1253
    %v1255 = vlaneseq
    %v1256 = vshrl.u32 %v1255, 7
    %v1257 = vsub.s32 5, %v1256
    %v1258 = vrot.slane %v1233, %v1257
    %v1259 = vlaneseq
    %v1260 = vshrl.u32 %v1259, 7
    %v1261 = vsub.s32 6, %v1260
    %v1262 = vrot.slane %v1233, %v1261
    %v1398 = vunpack.c.l.b16 %v1105
    %v1399 = vunpack.c.h.b16 %v1105
    %v1400 = vunpack.c.l.b16 %v1106
    %v1401 = vunpack.c.h.b16 %v1106
    %v1402 = vunpack.c.l.b16 %v1107
    %v1403 = vunpack.c.h.b16 %v1107
    %v1404 = vunpack.c.l.b16 %v1108
    %v1405 = vunpack.c.l.b16 %v1109
    %v1406 = vunpack.c.h.b16 %v1109
    %v1407 = vunpack.c.l.b16 %v1110
    %v1408 = vunpack.c.h.b16 %v1110
    %v1409 = vunpack.c.l.b16 %v1111
    %v1410 = vunpack.c.h.b16 %v1111
    %v1411 = vunpack.c.l.b16 %v1112
    %v1412 = vunpack.c.l.b16 %v1113
    %v1413 = vunpack.c.h.b16 %v1113
    %v1414 = vunpack.c.l.b16 %v1114
    %v1415 = vunpack.c.h.b16 %v1114
    %v1416 = vunpack.c.l.b16 %v1115
    %v1417 = vunpack.c.h.b16 %v1115
    %v1418 = vunpack.c.l.b16 %v1116
    %v1419 = vunpack.c.l.b16 %v1117
    %v1420 = vunpack.c.h.b16 %v1117
    %v1421 = vunpack.c.l.b16 %v1118
    %v1422 = vunpack.c.h.b16 %v1118
    %v1423 = vunpack.c.l.b16 %v1119
    %v1424 = vunpack.c.h.b16 %v1119
    %v1425 = vunpack.c.l.b16 %v1120
    %v1426 = vunpack.c.l.b16 %v1121
    %v1427 = vunpack.c.h.b16 %v1121
    %v1428 = vunpack.c.l.b16 %v1122
    %v1429 = vunpack.c.h.b16 %v1122
    %v1430 = vunpack.c.l.b16 %v1123
    %v1431 = vunpack.c.h.b16 %v1123
    %v1432 = vunpack.c.l.b16 %v1124
    %v1433 = vunpack.c.l.b16 %v1125
    %v1434 = vunpack.c.h.b16 %v1125
    %v1435 = vunpack.c.l.b16 %v1126
    %v1436 = vunpack.c.h.b16 %v1126
    %v1437 = vunpack.c.l.b16 %v1127
    %v1438 = vunpack.c.h.b16 %v1127
    %v1439 = vunpack.c.l.b16 %v1128
    %v1440 = vunpack.c.l.b16 %v1129
    %v1441 = vunpack.c.h.b16 %v1129
    %v1442 = vunpack.c.l.b16 %v1130
    %v1443 = vunpack.c.h.b16 %v1130
    %v1444 = vunpack.c.l.b16 %v1131
    %v1445 = vunpack.c.h.b16 %v1131
    %v1446 = vunpack.c.l.b16 %v1132
    %v1447 = vunpack.c.l.b16 %v1133
    %v1448 = vunpack.c.h.b16 %v1133
    %v1449 = vunpack.c.l.b16 %v1134
    %v1450 = vunpack.c.h.b16 %v1134
    %v1451 = vunpack.c.l.b16 %v1135
    %v1452 = vunpack.c.h.b16 %v1135
    %v1453 = vunpack.c.l.b16 %v1136
    %v1454 = vunpack.c.l.b16 %v1137
    %v1455 = vunpack.c.h.b16 %v1137
    %v1456 = vunpack.c.l.b16 %v1138
    %v1457 = vunpack.c.h.b16 %v1138
    %v1458 = vunpack.c.l.b16 %v1139
    %v1459 = vunpack.c.h.b16 %v1139
    %v1460 = vunpack.c.l.b16 %v1140
    %v1461 = vunpack.c.l.b16 %v1141
    %v1462 = vunpack.c.h.b16 %v1141
    %v1463 = vunpack.c.l.b16 %v1142
    %v1464 = vunpack.c.h.b16 %v1142
    %v1465 = vunpack.c.l.b16 %v1143
    %v1466 = vunpack.c.h.b16 %v1143
    %v1467 = vunpack.c.l.b16 %v1144
    %v1468 = vunpack.c.l.b16 %v1145
    %v1469 = vunpack.c.h.b16 %v1145
    %v1470 = vunpack.c.l.b16 %v1146
    %v1471 = vunpack.c.h.b16 %v1146
    %v1472 = vunpack.c.l.b16 %v1147
    %v1473 = vunpack.c.h.b16 %v1147
    %v1474 = vunpack.c.l.b16 %v1148
    %v1475 = vunpack.c.l.b16 %v1149
    %v1476 = vunpack.c.h.b16 %v1149
    %v1477 = vunpack.c.l.b16 %v1150
    %v1478 = vunpack.c.h.b16 %v1150
    %v1479 = vunpack.c.l.b16 %v1151
    %v1480 = vunpack.c.h.b16 %v1151
    %v1481 = vunpack.c.l.b16 %v1152
    %v1482 = vunpack.c.l.b16 %v1153
    %v1483 = vunpack.c.h.b16 %v1153
    %v1484 = vunpack.c.l.b16 %v1154
    %v1485 = vunpack.c.h.b16 %v1154
    %v1486 = vunpack.c.l.b16 %v1155
    %v1487 = vunpack.c.h.b16 %v1155
    %v1488 = vunpack.c.l.b16 %v1156
    %v1489 = vunpack.c.l.b16 %v1157
    %v1490 = vunpack.c.h.b16 %v1157
    %v1491 = vunpack.c.l.b16 %v1158
    %v1492 = vunpack.c.h.b16 %v1158
    %v1493 = vunpack.c.l.b16 %v1159
    %v1494 = vunpack.c.h.b16 %v1159
    %v1495 = vunpack.c.l.b16 %v1160
    %v1496 = vunpack.c.l.b16 %v1161
    %v1497 = vunpack.c.h.b16 %v1161
    %v1498 = vunpack.c.l.b16 %v1162
    %v1499 = vunpack.c.h.b16 %v1162
    %v1500 = vunpack.c.l.b16 %v1163
    %v1501 = vunpack.c.h.b16 %v1163
    %v1502 = vunpack.c.l.b16 %v1164
    %v1503 = vunpack.c.l.b16 %v1165
    %v1504 = vunpack.c.h.b16 %v1165
    %v1505 = vunpack.c.l.b16 %v1166
    %v1506 = vunpack.c.h.b16 %v1166
    %v1507 = vunpack.c.l.b16 %v1167
    %v1508 = vunpack.c.h.b16 %v1167
    %v1509 = vunpack.c.l.b16 %v1168
    %v1510 = vunpack.c.l.b16 %v1169
    %v1511 = vunpack.c.h.b16 %v1169
    %v1512 = vunpack.c.l.b16 %v1170
    %v1513 = vunpack.c.h.b16 %v1170
    %v1514 = vunpack.c.l.b16 %v1171
    %v1515 = vunpack.c.h.b16 %v1171
    %v1516 = vunpack.c.l.b16 %v1172
    %v1517 = vunpack.c.l.b16 %v1173
    %v1518 = vunpack.c.h.b16 %v1173
    %v1519 = vunpack.c.l.b16 %v1174
    %v1520 = vunpack.c.h.b16 %v1174
    %v1521 = vunpack.c.l.b16 %v1175
    %v1522 = vunpack.c.h.b16 %v1175
    %v1523 = vunpack.c.l.b16 %v1176
    %v1524 = vunpack.c.l.b16 %v1177
    %v1525 = vunpack.c.h.b16 %v1177
    %v1526 = vunpack.c.l.b16 %v1178
    %v1527 = vunpack.c.h.b16 %v1178
    %v1528 = vunpack.c.l.b16 %v1179
    %v1529 = vunpack.c.h.b16 %v1179
    %v1530 = vunpack.c.l.b16 %v1180
    %v1531 = vunpack.c.l.b16 %v1181
    %v1532 = vunpack.c.h.b16 %v1181
    %v1533 = vunpack.c.l.b16 %v1182
    %v1534 = vunpack.c.h.b16 %v1182
    %v1535 = vunpack.c.l.b16 %v1183
    %v1536 = vunpack.c.h.b16 %v1183
    %v1537 = vunpack.c.l.b16 %v1184
    %v1538 = vunpack.c.l.b16 %v1185
    %v1539 = vunpack.c.h.b16 %v1185
    %v1540 = vunpack.c.l.b16 %v1186
    %v1541 = vunpack.c.h.b16 %v1186
    %v1542 = vunpack.c.l.b16 %v1187
    %v1543 = vunpack.c.h.b16 %v1187
    %v1544 = vunpack.c.l.b16 %v1188
    %v1545 = vunpack.c.l.b16 %v1189
    %v1546 = vunpack.c.h.b16 %v1189
    %v1547 = vunpack.c.l.b16 %v1190
    %v1548 = vunpack.c.h.b16 %v1190
    %v1549 = vunpack.c.l.b16 %v1191
    %v1550 = vunpack.c.h.b16 %v1191
    %v1551 = vunpack.c.l.b16 %v1192
    %v1552 = vunpack.c.l.b16 %v1193
    %v1553 = vunpack.c.h.b16 %v1193
    %v1554 = vunpack.c.l.b16 %v1194
    %v1555 = vunpack.c.h.b16 %v1194
    %v1556 = vunpack.c.l.b16 %v1195
    %v1557 = vunpack.c.h.b16 %v1195
    %v1558 = vunpack.c.l.b16 %v1196
    %v1559 = vunpack.c.l.b16 %v1197
    %v1560 = vunpack.c.h.b16 %v1197
    %v1561 = vunpack.c.l.b16 %v1198
    %v1562 = vunpack.c.h.b16 %v1198
    %v1563 = vunpack.c.l.b16 %v1199
    %v1564 = vunpack.c.h.b16 %v1199
    %v1565 = vunpack.c.l.b16 %v1200
    %v1566 = vunpack.c.l.b16 %v1201
    %v1567 = vunpack.c.h.b16 %v1201
    %v1568 = vunpack.c.l.b16 %v1202
    %v1569 = vunpack.c.h.b16 %v1202
    %v1570 = vunpack.c.l.b16 %v1203
    %v1571 = vunpack.c.h.b16 %v1203
    %v1572 = vunpack.c.l.b16 %v1204
    %v1573 = vunpack.c.l.b16 %v1205
    %v1574 = vunpack.c.h.b16 %v1205
    %v1575 = vunpack.c.l.b16 %v1206
    %v1576 = vunpack.c.h.b16 %v1206
    %v1577 = vunpack.c.l.b16 %v1207
    %v1578 = vunpack.c.h.b16 %v1207
    %v1579 = vunpack.c.l.b16 %v1208
    %v1580 = vunpack.c.l.b16 %v1209
    %v1581 = vunpack.c.h.b16 %v1209
    %v1582 = vunpack.c.l.b16 %v1210
    %v1583 = vunpack.c.h.b16 %v1210
    %v1584 = vunpack.c.l.b16 %v1211
    %v1585 = vunpack.c.h.b16 %v1211
    %v1586 = vunpack.c.l.b16 %v1212
    %v1587 = vunpack.c.l.b16 %v1213
    %v1588 = vunpack.c.h.b16 %v1213
    %v1589 = vunpack.c.l.b16 %v1214
    %v1590 = vunpack.c.h.b16 %v1214
    %v1591 = vunpack.c.l.b16 %v1215
    %v1592 = vunpack.c.h.b16 %v1215
    %v1593 = vunpack.c.l.b16 %v1216
    %v1594 = vunpack.c.l.b16 %v1217
    %v1595 = vunpack.c.h.b16 %v1217
    %v1596 = vunpack.c.l.b16 %v1218
    %v1597 = vunpack.c.h.b16 %v1218
    %v1598 = vunpack.c.l.b16 %v1219
    %v1599 = vunpack.c.h.b16 %v1219
    %v1600 = vunpack.c.l.b16 %v1220
    %v1601 = vunpack.c.l.b16 %v1221
    %v1602 = vunpack.c.h.b16 %v1221
    %v1603 = vunpack.c.l.b16 %v1222
    %v1604 = vunpack.c.h.b16 %v1222
    %v1605 = vunpack.c.l.b16 %v1223
    %v1606 = vunpack.c.h.b16 %v1223
    %v1607 = vunpack.c.l.b16 %v1224
    %v1608 = vunpack.c.l.b16 %v1225
    %v1609 = vunpack.c.h.b16 %v1225
    %v1610 = vunpack.c.l.b16 %v1226
    %v1611 = vunpack.c.h.b16 %v1226
    %v1612 = vunpack.c.l.b16 %v1227
    %v1613 = vunpack.c.h.b16 %v1227
    %v1614 = vunpack.c.l.b16 %v1228
    %v1615 = vunpack.c.l.b16 %v1229
    %v1616 = vunpack.c.h.b16 %v1229
    %v1617 = vunpack.c.l.b16 %v1230
    %v1618 = vunpack.c.h.b16 %v1230
    %v1619 = vunpack.c.l.b16 %v1231
    %v1620 = vunpack.c.h.b16 %v1231
    %v1621 = vunpack.c.l.b16 %v1232
    %v1622 = vpack.c.b16 %v1405, %v1398
    %v1623 = vpack.c.b16 %v1406, %v1399
    %v1624 = vpack.c.b16 %v1407, %v1400
    %v1625 = vpack.c.b16 %v1408, %v1401
    %v1626 = vpack.c.b16 %v1409, %v1402
    %v1627 = vpack.c.b16 %v1410, %v1403
    %v1628 = vpack.c.b16 %v1411, %v1404
    %v1629 = vpack.c.b16 %v1419, %v1412
    %v1630 = vpack.c.b16 %v1420, %v1413
    %v1631 = vpack.c.b16 %v1421, %v1414
    %v1632 = vpack.c.b16 %v1422, %v1415
    %v1633 = vpack.c.b16 %v1423, %v1416
    %v1634 = vpack.c.b16 %v1424, %v1417
    %v1635 = vpack.c.b16 %v1425, %v1418
    %v1636 = vpack.c.b16 %v1433, %v1426
    %v1637 = vpack.c.b16 %v1434, %v1427
    %v1638 = vpack.c.b16 %v1435, %v1428
    %v1639 = vpack.c.b16 %v1436, %v1429
    %v1640 = vpack.c.b16 %v1437, %v1430
    %v1641 = vpack.c.b16 %v1438, %v1431
    %v1642 = vpack.c.b16 %v1439, %v1432
    %v1643 = vpack.c.b16 %v1447, %v1440
    %v1644 = vpack.c.b16 %v1448, %v1441
    %v1645 = vpack.c.b16 %v1449, %v1442
    %v1646 = vpack.c.b16 %v1450, %v1443
    %v1647 = vpack.c.b16 %v1451, %v1444
    %v1648 = vpack.c.b16 %v1452, %v1445
    %v1649 = vpack.c.b16 %v1453, %v1446
    %v1650 = vpack.c.b16 %v1461, %v1454
    %v1651 = vpack.c.b16 %v1462, %v1455
    %v1652 = vpack.c.b16 %v1463, %v1456
    %v1653 = vpack.c.b16 %v1464, %v1457
    %v1654 = vpack.c.b16 %v1465, %v1458
    %v1655 = vpack.c.b16 %v1466, %v1459
    %v1656 = vpack.c.b16 %v1467, %v1460
    %v1657 = vpack.c.b16 %v1475, %v1468
    %v1658 = vpack.c.b16 %v1476, %v1469
    %v1659 = vpack.c.b16 %v1477, %v1470
    %v1660 = vpack.c.b16 %v1478, %v1471
    %v1661 = vpack.c.b16 %v1479, %v1472
    %v1662 = vpack.c.b16 %v1480, %v1473
    %v1663 = vpack.c.b16 %v1481, %v1474
    %v1664 = vpack.c.b16 %v1489, %v1482
    %v1665 = vpack.c.b16 %v1490, %v1483
    %v1666 = vpack.c.b16 %v1491, %v1484
    %v1667 = vpack.c.b16 %v1492, %v1485
    %v1668 = vpack.c.b16 %v1493, %v1486
    %v1669 = vpack.c.b16 %v1494, %v1487
    %v1670 = vpack.c.b16 %v1495, %v1488
    %v1671 = vpack.c.b16 %v1503, %v1496
    %v1672 = vpack.c.b16 %v1504, %v1497
    %v1673 = vpack.c.b16 %v1505, %v1498
    %v1674 = vpack.c.b16 %v1506, %v1499
    %v1675 = vpack.c.b16 %v1507, %v1500
    %v1676 = vpack.c.b16 %v1508, %v1501
    %v1677 = vpack.c.b16 %v1509, %v1502
    %v1678 = vpack.c.b16 %v1517, %v1510
    %v1679 = vpack.c.b16 %v1518, %v1511
    %v1680 = vpack.c.b16 %v1519, %v1512
    %v1681 = vpack.c.b16 %v1520, %v1513
    %v1682 = vpack.c.b16 %v1521, %v1514
    %v1683 = vpack.c.b16 %v1522, %v1515
    %v1684 = vpack.c.b16 %v1523, %v1516
    %v1685 = vpack.c.b16 %v1531, %v1524
    %v1686 = vpack.c.b16 %v1532, %v1525
    %v1687 = vpack.c.b16 %v1533, %v1526
    %v1688 = vpack.c.b16 %v1534, %v1527
    %v1689 = vpack.c.b16 %v1535, %v1528
    %v1690 = vpack.c.b16 %v1536, %v1529
    %v1691 = vpack.c.b16 %v1537, %v1530
    %v1692 = vpack.c.b16 %v1545, %v1538
    %v1693 = vpack.c.b16 %v1546, %v1539
    %v1694 = vpack.c.b16 %v1547, %v1540
    %v1695 = vpack.c.b16 %v1548, %v1541
    %v1696 = vpack.c.b16 %v1549, %v1542
    %v1697 = vpack.c.b16 %v1550, %v1543
    %v1698 = vpack.c.b16 %v1551, %v1544
    %v1699 = vpack.c.b16 %v1559, %v1552
    %v1700 = vpack.c.b16 %v1560, %v1553
    %v1701 = vpack.c.b16 %v1561, %v1554
    %v1702 = vpack.c.b16 %v1562, %v1555
    %v1703 = vpack.c.b16 %v1563, %v1556
    %v1704 = vpack.c.b16 %v1564, %v1557
    %v1705 = vpack.c.b16 %v1565, %v1558
    %v1706 = vpack.c.b16 %v1573, %v1566
    %v1707 = vpack.c.b16 %v1574, %v1567
    %v1708 = vpack.c.b16 %v1575, %v1568
    %v1709 = vpack.c.b16 %v1576, %v1569
    %v1710 = vpack.c.b16 %v1577, %v1570
    %v1711 = vpack.c.b16 %v1578, %v1571
    %v1712 = vpack.c.b16 %v1579, %v1572
    %v1713 = vpack.c.b16 %v1587, %v1580
    %v1714 = vpack.c.b16 %v1588, %v1581
    %v1715 = vpack.c.b16 %v1589, %v1582
    %v1716 = vpack.c.b16 %v1590, %v1583
    %v1717 = vpack.c.b16 %v1591, %v1584
    %v1718 = vpack.c.b16 %v1592, %v1585
    %v1719 = vpack.c.b16 %v1593, %v1586
    %v1720 = vpack.c.b16 %v1601, %v1594
    %v1721 = vpack.c.b16 %v1602, %v1595
    %v1722 = vpack.c.b16 %v1603, %v1596
    %v1723 = vpack.c.b16 %v1604, %v1597
    %v1724 = vpack.c.b16 %v1605, %v1598
    %v1725 = vpack.c.b16 %v1606, %v1599
    %v1726 = vpack.c.b16 %v1607, %v1600
    %v1727 = vpack.c.b16 %v1615, %v1608
    %v1728 = vpack.c.b16 %v1616, %v1609
    %v1729 = vpack.c.b16 %v1617, %v1610
    %v1730 = vpack.c.b16 %v1618, %v1611
    %v1731 = vpack.c.b16 %v1619, %v1612
    %v1732 = vpack.c.b16 %v1620, %v1613
    %v1733 = vpack.c.b16 %v1621, %v1614
    %1846 = vmatprep.subr.bf16.mxu0 %v1623
    %1847 = vmatpush1.bf16.msra.mxu0 %v1622
    %1848 = vmatprep.subr.bf16.mxu0 %v1630
    %1849 = vmatpush1.bf16.msra.mxu0 %v1629
    %1850 = vmatprep.subr.bf16.mxu0 %v1637
    %1851 = vmatpush1.bf16.msra.mxu0 %v1636
    %1852 = vmatprep.subr.bf16.mxu0 %v1644
    %1853 = vmatpush1.bf16.msra.mxu0 %v1643
    %1854 = vmatprep.subr.bf16.mxu0 %v1651
    %1855 = vmatpush1.bf16.msra.mxu0 %v1650
    %1856 = vmatprep.subr.bf16.mxu0 %v1658
    %1857 = vmatpush1.bf16.msra.mxu0 %v1657
    %1858 = vmatprep.subr.bf16.mxu0 %v1665
    %1859 = vmatpush1.bf16.msra.mxu0 %v1664
    %1860 = vmatprep.subr.bf16.mxu0 %v1672
    %1861 = vmatpush1.bf16.msra.mxu0 %v1671
    %1862 = vmatprep.subr.bf16.mxu0 %v1679
    %1863 = vmatpush1.bf16.msra.mxu0 %v1678
    %1864 = vmatprep.subr.bf16.mxu0 %v1686
    %1865 = vmatpush1.bf16.msra.mxu0 %v1685
    %1866 = vmatprep.subr.bf16.mxu0 %v1693
    %1867 = vmatpush1.bf16.msra.mxu0 %v1692
    %1868 = vmatprep.subr.bf16.mxu0 %v1700
    %1869 = vmatpush1.bf16.msra.mxu0 %v1699
    %1870 = vmatprep.subr.bf16.mxu0 %v1707
    %1871 = vmatpush1.bf16.msra.mxu0 %v1706
    %1872 = vmatprep.subr.bf16.mxu0 %v1714
    %1873 = vmatpush1.bf16.msra.mxu0 %v1713
    %1874 = vmatprep.subr.bf16.mxu0 %v1721
    %1875 = vmatpush1.bf16.msra.mxu0 %v1720
    %1876 = vmatprep.subr.bf16.mxu0 %v1728
    %1877 = vmatpush1.bf16.msra.mxu0 %v1727
    %1878 = vmatprep.mubr.bf16.mxu0 %v1104
    %1879 = vmatmul.mubr.bf16.gmra.mrb[0].mxu0 %v1103
    %v1880 = vpop.f32.mrb[0].mxu0
    %v1881 = vadd.f32 %v1238, %v1880
    %v1882 = vpop.f32.mrb[0].mxu0
    %v1883 = vadd.f32 %v1242, %v1882
    %v1884 = vpop.f32.mrb[0].mxu0
    %v1885 = vpop.f32.mrb[0].mxu0
    %1886 = vdwg.mxu0
    %1887 = vmatprep.subr.bf16.mxu0 %v1625
    %1888 = vmatpush1.bf16.msra.mxu0 %v1624
    %1889 = vmatprep.subr.bf16.mxu0 %v1632
    %1890 = vmatpush1.bf16.msra.mxu0 %v1631
    %1891 = vmatprep.subr.bf16.mxu0 %v1639
    %1892 = vmatpush1.bf16.msra.mxu0 %v1638
    %1893 = vmatprep.subr.bf16.mxu0 %v1646
    %1894 = vmatpush1.bf16.msra.mxu0 %v1645
    %1895 = vmatprep.subr.bf16.mxu0 %v1653
    %1896 = vmatpush1.bf16.msra.mxu0 %v1652
    %1897 = vmatprep.subr.bf16.mxu0 %v1660
    %1898 = vmatpush1.bf16.msra.mxu0 %v1659
    %1899 = vmatprep.subr.bf16.mxu0 %v1667
    %1900 = vmatpush1.bf16.msra.mxu0 %v1666
    %1901 = vmatprep.subr.bf16.mxu0 %v1674
    %1902 = vmatpush1.bf16.msra.mxu0 %v1673
    %1903 = vmatprep.subr.bf16.mxu0 %v1681
    %1904 = vmatpush1.bf16.msra.mxu0 %v1680
    %1905 = vmatprep.subr.bf16.mxu0 %v1688
    %1906 = vmatpush1.bf16.msra.mxu0 %v1687
    %1907 = vmatprep.subr.bf16.mxu0 %v1695
    %1908 = vmatpush1.bf16.msra.mxu0 %v1694
    %1909 = vmatprep.subr.bf16.mxu0 %v1702
    %1910 = vmatpush1.bf16.msra.mxu0 %v1701
    %1911 = vmatprep.subr.bf16.mxu0 %v1709
    %1912 = vmatpush1.bf16.msra.mxu0 %v1708
    %1913 = vmatprep.subr.bf16.mxu0 %v1716
    %1914 = vmatpush1.bf16.msra.mxu0 %v1715
    %1915 = vmatprep.subr.bf16.mxu0 %v1723
    %1916 = vmatpush1.bf16.msra.mxu0 %v1722
    %1917 = vmatprep.subr.bf16.mxu0 %v1730
    %1918 = vmatpush1.bf16.msra.mxu0 %v1729
    %1919 = vmatprep.mubr.bf16.mxu0 %v1104
    %1920 = vmatmul.mubr.bf16.gmra.mrb[0].mxu0 %v1103
    %v1921 = vpop.f32.mrb[0].mxu0
    %v1922 = vadd.f32 %v1246, %v1921
    %v1923 = vpop.f32.mrb[0].mxu0
    %v1924 = vadd.f32 %v1250, %v1923
    %v1925 = vpop.f32.mrb[0].mxu0
    %v1926 = vpop.f32.mrb[0].mxu0
    %1927 = vdwg.mxu0
    %1928 = vmatprep.subr.bf16.mxu0 %v1627
    %1929 = vmatpush1.bf16.msra.mxu0 %v1626
    %1930 = vmatprep.subr.bf16.mxu0 %v1634
    %1931 = vmatpush1.bf16.msra.mxu0 %v1633
    %1932 = vmatprep.subr.bf16.mxu0 %v1641
    %1933 = vmatpush1.bf16.msra.mxu0 %v1640
    %1934 = vmatprep.subr.bf16.mxu0 %v1648
    %1935 = vmatpush1.bf16.msra.mxu0 %v1647
    %1936 = vmatprep.subr.bf16.mxu0 %v1655
    %1937 = vmatpush1.bf16.msra.mxu0 %v1654
    %1938 = vmatprep.subr.bf16.mxu0 %v1662
    %1939 = vmatpush1.bf16.msra.mxu0 %v1661
    %1940 = vmatprep.subr.bf16.mxu0 %v1669
    %1941 = vmatpush1.bf16.msra.mxu0 %v1668
    %1942 = vmatprep.subr.bf16.mxu0 %v1676
    %1943 = vmatpush1.bf16.msra.mxu0 %v1675
    %1944 = vmatprep.subr.bf16.mxu0 %v1683
    %1945 = vmatpush1.bf16.msra.mxu0 %v1682
    %1946 = vmatprep.subr.bf16.mxu0 %v1690
    %1947 = vmatpush1.bf16.msra.mxu0 %v1689
    %1948 = vmatprep.subr.bf16.mxu0 %v1697
    %1949 = vmatpush1.bf16.msra.mxu0 %v1696
    %1950 = vmatprep.subr.bf16.mxu0 %v1704
    %1951 = vmatpush1.bf16.msra.mxu0 %v1703
    %1952 = vmatprep.subr.bf16.mxu0 %v1711
    %1953 = vmatpush1.bf16.msra.mxu0 %v1710
    %1954 = vmatprep.subr.bf16.mxu0 %v1718
    %1955 = vmatpush1.bf16.msra.mxu0 %v1717
    %1956 = vmatprep.subr.bf16.mxu0 %v1725
    %1957 = vmatpush1.bf16.msra.mxu0 %v1724
    %1958 = vmatprep.subr.bf16.mxu0 %v1732
    %1959 = vmatpush1.bf16.msra.mxu0 %v1731
    %1960 = vmatprep.mubr.bf16.mxu0 %v1104
    %1961 = vmatmul.mubr.bf16.gmra.mrb[0].mxu0 %v1103
    %v1962 = vpop.f32.mrb[0].mxu0
    %v1963 = vadd.f32 %v1254, %v1962
    %v1964 = vpop.f32.mrb[0].mxu0
    %v1965 = vadd.f32 %v1258, %v1964
    %v1966 = vpop.f32.mrb[0].mxu0
    %v1967 = vpop.f32.mrb[0].mxu0
    %1968 = vdwg.mxu0
    %1969 = vmatprep.subr.bf16.mxu0 0
    %1970 = vmatpush1.bf16.msra.mxu0 %v1628
    %1971 = vmatprep.subr.bf16.mxu0 0
    %1972 = vmatpush1.bf16.msra.mxu0 %v1635
    %1973 = vmatprep.subr.bf16.mxu0 0
    %1974 = vmatpush1.bf16.msra.mxu0 %v1642
    %1975 = vmatprep.subr.bf16.mxu0 0
    %1976 = vmatpush1.bf16.msra.mxu0 %v1649
    %1977 = vmatprep.subr.bf16.mxu0 0
    %1978 = vmatpush1.bf16.msra.mxu0 %v1656
    %1979 = vmatprep.subr.bf16.mxu0 0
    %1980 = vmatpush1.bf16.msra.mxu0 %v1663
    %1981 = vmatprep.subr.bf16.mxu0 0
    %1982 = vmatpush1.bf16.msra.mxu0 %v1670
    %1983 = vmatprep.subr.bf16.mxu0 0
    %1984 = vmatpush1.bf16.msra.mxu0 %v1677
    %1985 = vmatprep.subr.bf16.mxu0 0
    %1986 = vmatpush1.bf16.msra.mxu0 %v1684
    %1987 = vmatprep.subr.bf16.mxu0 0
    %1988 = vmatpush1.bf16.msra.mxu0 %v1691
    %1989 = vmatprep.subr.bf16.mxu0 0
    %1990 = vmatpush1.bf16.msra.mxu0 %v1698
    %1991 = vmatprep.subr.bf16.mxu0 0
    %1992 = vmatpush1.bf16.msra.mxu0 %v1705
    %1993 = vmatprep.subr.bf16.mxu0 0
    %1994 = vmatpush1.bf16.msra.mxu0 %v1712
    %1995 = vmatprep.subr.bf16.mxu0 0
    %1996 = vmatpush1.bf16.msra.mxu0 %v1719
    %1997 = vmatprep.subr.bf16.mxu0 0
    %1998 = vmatpush1.bf16.msra.mxu0 %v1726
    %1999 = vmatprep.subr.bf16.mxu0 0
    %2000 = vmatpush1.bf16.msra.mxu0 %v1733
    %2001 = vmatprep.mubr.bf16.mxu0 %v1104
    %2002 = vmatmul.mubr.bf16.gmra.mrb[0].mxu0 %v1103
    %v2003 = vpop.f32.mrb[0].mxu0
    %v2004 = vadd.f32 %v1262, %v2003
    %v2005 = vpop.f32.mrb[0].mxu0
    %v2006 = vpop.f32.mrb[0].mxu0
    %v2007 = vpop.f32.mrb[0].mxu0
    %2008 = vdwg.mxu0
    %v2009 = vsub.f32 0.0, %v1881
    %v2010 = vsub.f32 0.0, %v1883
    %v2011 = vsub.f32 0.0, %v1922
    %v2012 = vsub.f32 0.0, %v1924
    %v2013 = vsub.f32 0.0, %v1963
    %v2014 = vsub.f32 0.0, %v1965
    %v2015 = vsub.f32 0.0, %v2004
    %v2016 = vmul.f32 %v2009, 1.442695
    %v2017 = vpow.pop %v2016
    %v2018 = vmul.f32 %v2010, 1.442695
    %v2019 = vpow.pop %v2018
    %v2020 = vmul.f32 %v2011, 1.442695
    %v2021 = vpow.pop %v2020
    %v2022 = vmul.f32 %v2012, 1.442695
    %v2023 = vpow.pop %v2022
    %v2024 = vmul.f32 %v2013, 1.442695
    %v2025 = vpow.pop %v2024
    %v2026 = vmul.f32 %v2014, 1.442695
    %v2027 = vpow.pop %v2026
    %v2028 = vmul.f32 %v2015, 1.442695
    %v2029 = vpow.pop %v2028
    %v2030 = vadd.f32 %v2017, 1.0
    %v2031 = vadd.f32 %v2019, 1.0
    %v2032 = vadd.f32 %v2021, 1.0
    %v2033 = vadd.f32 %v2023, 1.0
    %v2034 = vadd.f32 %v2025, 1.0
    %v2035 = vadd.f32 %v2027, 1.0
    %v2036 = vadd.f32 %v2029, 1.0
    %v2037 = vrcp.pop %v2030
    %v2038 = vrcp.pop %v2031
    %v2039 = vrcp.pop %v2032
    %v2040 = vrcp.pop %v2033
    %v2041 = vrcp.pop %v2034
    %v2042 = vrcp.pop %v2035
    %v2043 = vrcp.pop %v2036
    %v2044 = vpack.c.bf16 %v2037, %v2037
    %v2045 = vpack.c.bf16 %v2038, %v2038
    %v2046 = vpack.c.bf16 %v2039, %v2039
    %v2047 = vpack.c.bf16 %v2040, %v2040
    %v2048 = vpack.c.bf16 %v2041, %v2041
    %v2049 = vpack.c.bf16 %v2042, %v2042
    %v2050 = vpack.c.bf16 %v2043, %v2043
    %v2058 = vunpack.c.l.b16 %v2044
    %v2059 = vunpack.c.l.b16 %v2045
    %v2060 = vunpack.c.l.b16 %v2046
    %v2061 = vunpack.c.l.b16 %v2047
    %v2062 = vunpack.c.l.b16 %v2048
    %v2063 = vunpack.c.l.b16 %v2049
    %v2064 = vunpack.c.l.b16 %v2050
    %v2065 = vpack.c.b16 %v2059, %v2058
    %v2066 = vpack.c.b16 %v2061, %v2060
    %v2067 = vpack.c.b16 %v2063, %v2062
    %v2068 = vpack.c.b16 %v2064, %v2064
    %2073 = vst [vmem:[#allocation2] sm:$0xff] %v2065
    %2074 = vst [vmem:[#allocation2 + $0x8] sm:$0xff] %v2066
    %2075 = vst [vmem:[#allocation2 + $0x10] sm:$0xff] %v2067
    %vm2076 = vcmask 125952
    %2077 = vst.msk [vmem:[#allocation2 + $0x18] sm:$0xf] %vm2076, %v2068
    // Predicated region
    $region38: #{tpu_custom_call.1} parent=1 // pred_check
      _
    $region39: #{tpu_custom_call.1} parent=1 // pred_check_branch
      %2079 = sbr.rel (0) target = $region41
    $region40: #{tpu_custom_call.1} parent=1 // pred_region
      %s2081 = ssub.s32 448, 448
      %2082 = vsyncadd [#allocation3], %s2081
      %s2084 = sshll.u32 [#allocation2], 4
      %s2085 = int_to_ptr.vmem [resolvable:$true] %s2084
      %2087 = dma.vmem_to_hbm [thread:$0]  %s2085, 448, %s9, [#allocation3]
    $region41: #{tpu_custom_call.1} parent=1 // pred_fallthru
      _
    // Predicated region
    $region42: #{tpu_custom_call.1} parent=1 // pred_check
      _
    $region43: #{tpu_custom_call.1} parent=1 // pred_check_branch
      %2089 = sbr.rel (0) target = $region45
    $region44: #{tpu_custom_call.1} parent=1 // pred_region
      %2090 = dma.done [#allocation3], 448
    $region45: #{tpu_custom_call.1} parent=1 // pred_fallthru
      _
    %2091 = vsyncpa [#allocation3], 1

</llo_original>
